<compile_context>
chip_gen: v7x
topology: tpu7x:2x2x1
jax: 0.10.0
libtpu: 0.0.40
codegen_flags: <defaults>
</compile_context>

<pallas_src>
import functools

import jax
import jax.numpy as jnp
from jax.experimental import pallas as pl
from jax.experimental.pallas import tpu as pltpu

LN_EPS = 1e-5


def _round_up(x, m):
    return ((x + m - 1) // m) * m


def _pick_time_chunk(T, target):
    """Largest divisor of T that is <= target (exact division -> no time padding)."""
    for tt in range(min(T, target), 0, -1):
        if T % tt == 0:
            return tt
    return T


def lstm_kernel(x_ref, wih_ref, whh_ref, b_ref, gamma_ref, beta_ref,
                wfc_ref, bfc_ref, o_ref, h_sc, c_sc, gx_sc):
    # x_ref:   (TT, TB, Din) bf16  time-major chunk of this batch tile
    # wih_ref: (Din, 4H)     bf16  resident, single-buffered
    # whh_ref: (H, 4H)       bf16  resident, single-buffered
    # b_ref:   (1, 4H)       f32   fused b_ih + b_hh (gate order i,f,o,g)
    # gamma/beta: (1, H)     f32   LayerNorm affine
    # wfc_ref: (1, H)        f32   fc weight row
    # bfc_ref: (1, 1)        f32   fc bias (SMEM scalar)
    # o_ref:   (TB, 1)       f32   written only on the last time chunk
    # h_sc/c_sc: (TB, H)     f32   recurrent carries (persist across time chunks)
    # gx_sc:   (TT*TB, 4H)   bf16  hoisted input projection (+ bias) for this chunk
    t_idx = pl.program_id(1)
    n_t = pl.num_programs(1)
    TT, TB, Din = x_ref.shape
    H, G = whh_ref.shape

    @pl.when(t_idx == 0)
    def _():
        h_sc[...] = jnp.zeros_like(h_sc)
        c_sc[...] = jnp.zeros_like(c_sc)

    # --- Hoisted input projection: one well-shaped bf16 MXU matmul per chunk ----
    x_flat = x_ref[...].reshape(TT * TB, Din)
    gx = jnp.dot(x_flat, wih_ref[...], preferred_element_type=jnp.float32)
    gx_sc[...] = (gx + b_ref[...]).astype(jnp.bfloat16)   # fold bias once, bf16 store

    whh = whh_ref[...]                                     # (H, 4H) bf16, VMEM-resident

    def step(t, carry):
        h, c = carry                                       # f32 carries
        row0 = pl.multiple_of(t * TB, TB)
        # Recurrent path only: h @ W_hh on the MXU in bf16, f32 accumulation.
        g = (gx_sc[pl.ds(row0, TB), :]
             + jnp.dot(h.astype(jnp.bfloat16), whh,
                       preferred_element_type=jnp.float32))            # (TB, 4H)
        # Host-side gate order is (i, f, o, g): one sigmoid slab + one tanh slab.
        sig = jax.nn.sigmoid(g[:, :3 * H])
        i_g = sig[:, 0 * H:1 * H]
        f_g = sig[:, 1 * H:2 * H]
        o_g = sig[:, 2 * H:3 * H]
        g_g = jnp.tanh(g[:, 3 * H:])
        c = f_g * c + i_g * g_g
        h = o_g * jnp.tanh(c)
        return h, c

    h, c = jax.lax.fori_loop(0, TT, step, (h_sc[...], c_sc[...]),
                             unroll=min(TT, 8))
    h_sc[...] = h
    c_sc[...] = c

    @pl.when(t_idx == n_t - 1)
    def _():
        # LayerNorm over the hidden axis (LN is per-position, so norm-then-slice
        # == slice-then-norm; only the final h feeds the head).
        mean = jnp.mean(h, axis=-1, keepdims=True)
        cent = h - mean
        var = jnp.mean(cent * cent, axis=-1, keepdims=True)
        h_n = cent * jax.lax.rsqrt(var + LN_EPS) * gamma_ref[...] + beta_ref[...]
        # Dropout: identity in eval mode.
        # fc(H -> 1) as a VPU mul + lane reduce (no N=1 MXU matmul), then sigmoid.
        logits = jnp.sum(h_n * wfc_ref[...], axis=-1, keepdims=True) + bfc_ref[0, 0]
        o_ref[...] = jax.nn.sigmoid(logits).astype(o_ref.dtype)


@functools.partial(jax.jit, static_argnames=("block_b", "time_chunk", "interpret"))
def lstm_forward(x, params, *, block_b=128, time_chunk=16, interpret=False):
    """x: (B, T, input_size) f32 -> (B, 1) = sigmoid(fc(LN(lstm(x))[:, -1, :]))."""
    w_ih, w_hh, b_ih, b_hh, ln_g, ln_b, w_fc, b_fc = params
    B, T, Din = x.shape
    G, H = w_hh.shape                       # (4H, H)
    assert G == 4 * H

    # ---- Host-side prep ------------------------------------------------------
    # Reorder PyTorch gate blocks (i, f, g, o) -> (i, f, o, g) so the kernel can
    # apply one contiguous sigmoid over [:, :3H] and one tanh over [:, 3H:].
    def reorder(w):
        i, f, g, o = jnp.split(w, 4, axis=0)
        return jnp.concatenate([i, f, o, g], axis=0)

    w_ih_t = reorder(jnp.asarray(w_ih, jnp.float32)).T.astype(jnp.bfloat16)   # (Din, 4H)
    w_hh_t = reorder(jnp.asarray(w_hh, jnp.float32)).T.astype(jnp.bfloat16)   # (H, 4H)
    b_g = reorder((b_ih + b_hh).astype(jnp.float32)).reshape(1, G)
    gamma = ln_g.reshape(1, H).astype(jnp.float32)
    beta = ln_b.reshape(1, H).astype(jnp.float32)
    w_fc_r = w_fc.reshape(1, H).astype(jnp.float32)
    b_fc_s = b_fc.reshape(1, 1).astype(jnp.float32)

    # ---- Tiling --------------------------------------------------------------
    # Batch tile: multiple of 16 (bf16 sublane packing keeps in-kernel reshapes
    # tile-aligned); prefer >= 2 batch tiles so v7x's two TensorCores both get
    # work through the "parallel" axis (no effect for tiny B).
    tb_unit = 16
    B_al = _round_up(B, tb_unit)
    TB = min(_round_up(block_b, tb_unit), B_al)
    if B_al // TB < 2 and B_al >= 2 * tb_unit:
        TB = _round_up(-(-B_al // 2), tb_unit)
    B_pad = _round_up(B, TB)
    # Time chunk: exact divisor of T (time padding would perturb the recurrence
    # because zero-input steps still update h/c through the bias).
    TT = _pick_time_chunk(T, time_chunk)

    # Time-major bf16 x, batch padded so the grid divides evenly.
    # TODO(synk): this transpose/pad is one extra HBM pass over x; amortize it
    # (transpose once) if the same x feeds multiple forward calls.
    x_t = jnp.transpose(x.astype(jnp.bfloat16), (1, 0, 2))        # (T, B, Din)
    if B_pad != B:
        x_t = jnp.pad(x_t, ((0, 0), (0, B_pad - B), (0, 0)))

    # ---- Explicit VMEM budget (per perf review) --------------------------------
    vmem_bytes = (
        2 * TT * TB * Din * 2          # x chunk, double-buffered, bf16
        + TT * TB * G * 2              # projected-gate scratch (bf16)
        + 2 * TB * H * 4               # h/c carries (f32)
        + (Din + H) * G * 2            # W_ih^T + W_hh^T (bf16, single-buffered)
        + (G + 3 * H) * 4              # fused bias + LN affine + fc row (f32)
        + 2 * TB * 4                   # output tile
    )
    vmem_limit = int(min(max(2 * vmem_bytes + (8 << 20), 32 << 20), 64 << 20))

    resident = dict(pipeline_mode=pl.Buffered(1))   # constant-index operands: 1 buffer

    out = pl.pallas_call(
        lstm_kernel,
        out_shape=jax.ShapeDtypeStruct((B_pad, 1), jnp.float32),
        grid_spec=pltpu.PrefetchScalarGridSpec(
            num_scalar_prefetch=0,
            grid=(B_pad // TB, T // TT),
            in_specs=[
                pl.BlockSpec((TT, TB, Din), lambda i, t: (t, i, 0)),       # x chunk
                pl.BlockSpec((Din, G), lambda i, t: (0, 0), **resident),   # W_ih^T
                pl.BlockSpec((H, G), lambda i, t: (0, 0), **resident),     # W_hh^T
                pl.BlockSpec((1, G), lambda i, t: (0, 0), **resident),     # fused bias
                pl.BlockSpec((1, H), lambda i, t: (0, 0), **resident),     # LN gamma
                pl.BlockSpec((1, H), lambda i, t: (0, 0), **resident),     # LN beta
                pl.BlockSpec((1, H), lambda i, t: (0, 0), **resident),     # fc weight row
                pl.BlockSpec(memory_space=pltpu.MemorySpace.SMEM),         # fc bias
            ],
            out_specs=pl.BlockSpec((TB, 1), lambda i, t: (i, 0)),
            scratch_shapes=[
                pltpu.VMEM((TB, H), jnp.float32),         # h carry
                pltpu.VMEM((TB, H), jnp.float32),         # c carry
                pltpu.VMEM((TT * TB, G), jnp.bfloat16),   # hoisted input projection
            ],
        ),
        compiler_params=pltpu.CompilerParams(
            dimension_semantics=("parallel", "arbitrary"),
            vmem_limit_bytes=vmem_limit),
        interpret=interpret,
    )(x_t, w_ih_t, w_hh_t, b_g, gamma, beta, w_fc_r, b_fc_s)
    return out[:B]


def lstm_forward_ref(x, params):
    """Pure-JAX f32 reference of the same eval-mode forward."""
    w_ih, w_hh, b_ih, b_hh, ln_g, ln_b, w_fc, b_fc = params
    H = w_hh.shape[1]
    B = x.shape[0]

    def step(carry, x_t):
        h, c = carry
        g = x_t @ w_ih.T + h @ w_hh.T + b_ih + b_hh
        i, f, gg, o = jnp.split(g, 4, axis=-1)
        c = jax.nn.sigmoid(f) * c + jax.nn.sigmoid(i) * jnp.tanh(gg)
        h = jax.nn.sigmoid(o) * jnp.tanh(c)
        return (h, c), None

    h0 = jnp.zeros((B, H), jnp.float32)
    (h, _), _ = jax.lax.scan(step, (h0, h0), jnp.transpose(x, (1, 0, 2)))
    mu = h.mean(-1, keepdims=True)
    var = ((h - mu) ** 2).mean(-1, keepdims=True)
    h_n = (h - mu) * jax.lax.rsqrt(var + LN_EPS) * ln_g + ln_b
    return jax.nn.sigmoid(h_n @ w_fc.T + b_fc)


def init_params(key, input_size, hidden_size):
    """Deterministic init matching the PyTorch module:
       nn.LSTM default U(-1/sqrt(H), 1/sqrt(H)) for its weights/biases,
       fc: xavier_uniform_ weight + zero bias, LayerNorm: gamma=1, beta=0."""
    k_ih, k_hh, k_bih, k_bhh, k_fc = jax.random.split(key, 5)
    H, D = hidden_size, input_size
    k = 1.0 / float(jnp.sqrt(jnp.float32(H)))

    w_ih = jax.random.uniform(k_ih, (4 * H, D), jnp.float32, -k, k)
    w_hh = jax.random.uniform(k_hh, (4 * H, H), jnp.float32, -k, k)
    b_ih = jax.random.uniform(k_bih, (4 * H,), jnp.float32, -k, k)
    b_hh = jax.random.uniform(k_bhh, (4 * H,), jnp.float32, -k, k)

    ln_gamma = jnp.ones((H,), jnp.float32)
    ln_beta = jnp.zeros((H,), jnp.float32)

    bound = float(jnp.sqrt(6.0 / (H + 1)))      # xavier_uniform, fan_in=H, fan_out=1
    w_fc = jax.random.uniform(k_fc, (1, H), jnp.float32, -bound, bound)
    b_fc = jnp.zeros((1,), jnp.float32)

    return (w_ih, w_hh, b_ih, b_hh, ln_gamma, ln_beta, w_fc, b_fc)


if __name__ == "__main__":
    key = jax.random.PRNGKey(0)
    kx, kp = jax.random.split(key)

    batch, seq_len = 4, 8
    input_size, hidden_size, output_size, drop_out = 16, 32, 1, 0.1

    x = jax.random.normal(kx, (batch, seq_len, input_size), jnp.float32)
    params = init_params(kp, input_size, hidden_size)

    out = jax.block_until_ready(lstm_forward(x, params))
    ref = jax.block_until_ready(lstm_forward_ref(x, params))

    assert out.shape == (batch, 1), out.shape
    assert bool(jnp.all(jnp.isfinite(out)))
    assert bool(jnp.all((out > 0.0) & (out < 1.0)))
    # Loose tolerance: bf16 MXU inputs (x @ W_ih, h @ W_hh) with f32 accumulation.
    assert float(jnp.max(jnp.abs(out - ref))) < 5e-2, float(jnp.max(jnp.abs(out - ref)))
    print("KERNEL_OK")
</pallas_src>

<mosaic_0001>
module attributes {stable_mosaic.version = 11 : i64} {
  func.func @lstm_kernel(%arg0: i32, %arg1: i32, %arg2: memref<8x16x16xbf16, #tpu.memory_space<vmem>>, %arg3: memref<16x128xbf16, #tpu.memory_space<vmem>>, %arg4: memref<32x128xbf16, #tpu.memory_space<vmem>>, %arg5: memref<1x128xf32, #tpu.memory_space<vmem>>, %arg6: memref<1x32xf32, #tpu.memory_space<vmem>>, %arg7: memref<1x32xf32, #tpu.memory_space<vmem>>, %arg8: memref<1x32xf32, #tpu.memory_space<vmem>>, %arg9: memref<1x1xf32, #tpu.memory_space<smem>>, %arg10: memref<16x1xf32, #tpu.memory_space<vmem>>, %arg11: memref<16x32xf32, #tpu.memory_space<vmem>>, %arg12: memref<16x32xf32, #tpu.memory_space<vmem>>, %arg13: memref<128x128xbf16, #tpu.memory_space<vmem>>) attributes {dimension_semantics = [#tpu.dimension_semantics<parallel>, #tpu.dimension_semantics<arbitrary>], iteration_bounds = array<i64: 1, 1>, scalar_prefetch = 0 : i64, scratch_operands = 3 : i64, tpu.core_type = #tpu.core_type<tc>, window_params = [{transform_indices = @transform_0, window_bounds = array<i64: 8, 16, 16>}, {pipeline_mode = #tpu.pipeline_mode<synchronous>, transform_indices = @transform_1, window_bounds = array<i64: 16, 128>}, {pipeline_mode = #tpu.pipeline_mode<synchronous>, transform_indices = @transform_2, window_bounds = array<i64: 32, 128>}, {pipeline_mode = #tpu.pipeline_mode<synchronous>, transform_indices = @transform_3, window_bounds = array<i64: 1, 128>}, {pipeline_mode = #tpu.pipeline_mode<synchronous>, transform_indices = @transform_4, window_bounds = array<i64: 1, 32>}, {pipeline_mode = #tpu.pipeline_mode<synchronous>, transform_indices = @transform_5, window_bounds = array<i64: 1, 32>}, {pipeline_mode = #tpu.pipeline_mode<synchronous>, transform_indices = @transform_6, window_bounds = array<i64: 1, 32>}, {transform_indices = @transform_7, window_bounds = array<i64: 1, 1>}, {transform_indices = @transform_8, window_bounds = array<i64: 16, 1>}]} {
    %c0_i32 = arith.constant 0 : i32
    %0 = arith.cmpi eq, %arg1, %c0_i32 : i32
    %1 = arith.extui %0 : i1 to i32
    %c0_i32_0 = arith.constant 0 : i32
    %2 = arith.cmpi ne, %1, %c0_i32_0 : i32
    scf.if %2 {
      %cst_53 = arith.constant 0.000000e+00 : f32
      %212 = vector.broadcast %cst_53 : f32 to vector<16x32xf32>
      %c0_54 = arith.constant 0 : index
      %c0_55 = arith.constant 0 : index
      %213 = vector.load %arg11[%c0_54, %c0_55] : memref<16x32xf32, #tpu.memory_space<vmem>>, vector<16x32xf32>
      tpu.vector_store %arg11[%c0_54, %c0_55], %212 {strides = array<i32>} : memref<16x32xf32, #tpu.memory_space<vmem>>, vector<16x32xf32>,
      %cst_56 = arith.constant 0.000000e+00 : f32
      %214 = vector.broadcast %cst_56 : f32 to vector<16x32xf32>
      %c0_57 = arith.constant 0 : index
      %c0_58 = arith.constant 0 : index
      %215 = vector.load %arg12[%c0_57, %c0_58] : memref<16x32xf32, #tpu.memory_space<vmem>>, vector<16x32xf32>
      tpu.vector_store %arg12[%c0_57, %c0_58], %214 {strides = array<i32>} : memref<16x32xf32, #tpu.memory_space<vmem>>, vector<16x32xf32>,
    } else {
    }
    %c0 = arith.constant 0 : index
    %c0_1 = arith.constant 0 : index
    %c0_2 = arith.constant 0 : index
    %3 = vector.load %arg2[%c0, %c0_1, %c0_2] : memref<8x16x16xbf16, #tpu.memory_space<vmem>>, vector<8x16x16xbf16>
    %4 = vector.shape_cast %3 : vector<8x16x16xbf16> to vector<128x16xbf16>
    %c0_3 = arith.constant 0 : index
    %c0_4 = arith.constant 0 : index
    %5 = vector.load %arg3[%c0_3, %c0_4] : memref<16x128xbf16, #tpu.memory_space<vmem>>, vector<16x128xbf16>
    %cst = arith.constant dense<0.000000e+00> : vector<128x128xf32>
    %6 = tpu.matmul %4, %5, %cst {dimension_numbers = #tpu.dot_dimension_numbers<[1], [0], [0], [1], [0, 0, 1, 1], [], []>} : vector<128x16xbf16>, vector<16x128xbf16>, vector<128x128xf32> -> vector<128x128xf32>
    %c0_5 = arith.constant 0 : index
    %c0_6 = arith.constant 0 : index
    %7 = vector.load %arg5[%c0_5, %c0_6] : memref<1x128xf32, #tpu.memory_space<vmem>>, vector<1x128xf32>
    %8 = vector.broadcast %7 : vector<1x128xf32> to vector<128x128xf32>
    %9 = arith.addf %6, %8 : vector<128x128xf32>
    %10 = arith.truncf %9 : vector<128x128xf32> to vector<128x128xbf16>
    %c0_7 = arith.constant 0 : index
    %c0_8 = arith.constant 0 : index
    %11 = vector.load %arg13[%c0_7, %c0_8] : memref<128x128xbf16, #tpu.memory_space<vmem>>, vector<128x128xbf16>
    tpu.vector_store %arg13[%c0_7, %c0_8], %10 {strides = array<i32>} : memref<128x128xbf16, #tpu.memory_space<vmem>>, vector<128x128xbf16>,
    %c0_9 = arith.constant 0 : index
    %c0_10 = arith.constant 0 : index
    %12 = vector.load %arg4[%c0_9, %c0_10] : memref<32x128xbf16, #tpu.memory_space<vmem>>, vector<32x128xbf16>
    %c0_11 = arith.constant 0 : index
    %c0_12 = arith.constant 0 : index
    %13 = vector.load %arg11[%c0_11, %c0_12] : memref<16x32xf32, #tpu.memory_space<vmem>>, vector<16x32xf32>
    %c0_13 = arith.constant 0 : index
    %c0_14 = arith.constant 0 : index
    %14 = vector.load %arg12[%c0_13, %c0_14] : memref<16x32xf32, #tpu.memory_space<vmem>>, vector<16x32xf32>
    %c0_i32_15 = arith.constant 0 : i32
    %c16_i32 = arith.constant 16 : i32
    %15 = arith.muli %c0_i32_15, %c16_i32 : i32
    %16 = tpu.assume_multiple %15, 16 : i32
    %17 = arith.index_cast %16 : i32 to index
    %c0_16 = arith.constant 0 : index
    %18 = vector.load %arg13[%17, %c0_16] : memref<128x128xbf16, #tpu.memory_space<vmem>>, vector<16x128xbf16>
    %19 = arith.truncf %13 : vector<16x32xf32> to vector<16x32xbf16>
    %cst_17 = arith.constant dense<0.000000e+00> : vector<16x128xf32>
    %20 = tpu.matmul %19, %12, %cst_17 {dimension_numbers = #tpu.dot_dimension_numbers<[1], [0], [0], [1], [0, 0, 1, 1], [], []>} : vector<16x32xbf16>, vector<32x128xbf16>, vector<16x128xf32> -> vector<16x128xf32>
    %21 = arith.extf %18 : vector<16x128xbf16> to vector<16x128xf32>
    %22 = arith.addf %21, %20 : vector<16x128xf32>
    %23 = vector.extract_strided_slice %22 {offsets = [0, 0], sizes = [16, 96], strides = [1, 1]} : vector<16x128xf32> to vector<16x96xf32>
    %24 = arith.negf %23 : vector<16x96xf32>
    %25 = math.exp %24 : vector<16x96xf32>
    %cst_18 = arith.constant 1.000000e+00 : f32
    %26 = vector.broadcast %cst_18 : f32 to vector<16x96xf32>
    %27 = arith.addf %26, %25 : vector<16x96xf32>
    %28 = arith.divf %26, %27 : vector<16x96xf32>
    %29 = vector.extract_strided_slice %28 {offsets = [0, 0], sizes = [16, 32], strides = [1, 1]} : vector<16x96xf32> to vector<16x32xf32>
    %30 = vector.extract_strided_slice %28 {offsets = [0, 32], sizes = [16, 32], strides = [1, 1]} : vector<16x96xf32> to vector<16x32xf32>
    %31 = vector.extract_strided_slice %28 {offsets = [0, 64], sizes = [16, 32], strides = [1, 1]} : vector<16x96xf32> to vector<16x32xf32>
    %32 = vector.extract_strided_slice %22 {offsets = [0, 96], sizes = [16, 32], strides = [1, 1]} : vector<16x128xf32> to vector<16x32xf32>
    %33 = math.tanh %32 : vector<16x32xf32>
    %34 = arith.mulf %30, %14 : vector<16x32xf32>
    %35 = arith.mulf %29, %33 : vector<16x32xf32>
    %36 = arith.addf %34, %35 : vector<16x32xf32>
    %37 = math.tanh %36 : vector<16x32xf32>
    %38 = arith.mulf %31, %37 : vector<16x32xf32>
    %c1_i32 = arith.constant 1 : i32
    %c16_i32_19 = arith.constant 16 : i32
    %39 = arith.muli %c1_i32, %c16_i32_19 : i32
    %40 = tpu.assume_multiple %39, 16 : i32
    %41 = arith.index_cast %40 : i32 to index
    %c0_20 = arith.constant 0 : index
    %42 = vector.load %arg13[%41, %c0_20] : memref<128x128xbf16, #tpu.memory_space<vmem>>, vector<16x128xbf16>
    %43 = arith.truncf %38 : vector<16x32xf32> to vector<16x32xbf16>
    %cst_21 = arith.constant dense<0.000000e+00> : vector<16x128xf32>
    %44 = tpu.matmul %43, %12, %cst_21 {dimension_numbers = #tpu.dot_dimension_numbers<[1], [0], [0], [1], [0, 0, 1, 1], [], []>} : vector<16x32xbf16>, vector<32x128xbf16>, vector<16x128xf32> -> vector<16x128xf32>
    %45 = arith.extf %42 : vector<16x128xbf16> to vector<16x128xf32>
    %46 = arith.addf %45, %44 : vector<16x128xf32>
    %47 = vector.extract_strided_slice %46 {offsets = [0, 0], sizes = [16, 96], strides = [1, 1]} : vector<16x128xf32> to vector<16x96xf32>
    %48 = arith.negf %47 : vector<16x96xf32>
    %49 = math.exp %48 : vector<16x96xf32>
    %cst_22 = arith.constant 1.000000e+00 : f32
    %50 = vector.broadcast %cst_22 : f32 to vector<16x96xf32>
    %51 = arith.addf %50, %49 : vector<16x96xf32>
    %52 = arith.divf %50, %51 : vector<16x96xf32>
    %53 = vector.extract_strided_slice %52 {offsets = [0, 0], sizes = [16, 32], strides = [1, 1]} : vector<16x96xf32> to vector<16x32xf32>
    %54 = vector.extract_strided_slice %52 {offsets = [0, 32], sizes = [16, 32], strides = [1, 1]} : vector<16x96xf32> to vector<16x32xf32>
    %55 = vector.extract_strided_slice %52 {offsets = [0, 64], sizes = [16, 32], strides = [1, 1]} : vector<16x96xf32> to vector<16x32xf32>
    %56 = vector.extract_strided_slice %46 {offsets = [0, 96], sizes = [16, 32], strides = [1, 1]} : vector<16x128xf32> to vector<16x32xf32>
    %57 = math.tanh %56 : vector<16x32xf32>
    %58 = arith.mulf %54, %36 : vector<16x32xf32>
    %59 = arith.mulf %53, %57 : vector<16x32xf32>
    %60 = arith.addf %58, %59 : vector<16x32xf32>
    %61 = math.tanh %60 : vector<16x32xf32>
    %62 = arith.mulf %55, %61 : vector<16x32xf32>
    %c2_i32 = arith.constant 2 : i32
    %c16_i32_23 = arith.constant 16 : i32
    %63 = arith.muli %c2_i32, %c16_i32_23 : i32
    %64 = tpu.assume_multiple %63, 16 : i32
    %65 = arith.index_cast %64 : i32 to index
    %c0_24 = arith.constant 0 : index
    %66 = vector.load %arg13[%65, %c0_24] : memref<128x128xbf16, #tpu.memory_space<vmem>>, vector<16x128xbf16>
    %67 = arith.truncf %62 : vector<16x32xf32> to vector<16x32xbf16>
    %cst_25 = arith.constant dense<0.000000e+00> : vector<16x128xf32>
    %68 = tpu.matmul %67, %12, %cst_25 {dimension_numbers = #tpu.dot_dimension_numbers<[1], [0], [0], [1], [0, 0, 1, 1], [], []>} : vector<16x32xbf16>, vector<32x128xbf16>, vector<16x128xf32> -> vector<16x128xf32>
    %69 = arith.extf %66 : vector<16x128xbf16> to vector<16x128xf32>
    %70 = arith.addf %69, %68 : vector<16x128xf32>
    %71 = vector.extract_strided_slice %70 {offsets = [0, 0], sizes = [16, 96], strides = [1, 1]} : vector<16x128xf32> to vector<16x96xf32>
    %72 = arith.negf %71 : vector<16x96xf32>
    %73 = math.exp %72 : vector<16x96xf32>
    %cst_26 = arith.constant 1.000000e+00 : f32
    %74 = vector.broadcast %cst_26 : f32 to vector<16x96xf32>
    %75 = arith.addf %74, %73 : vector<16x96xf32>
    %76 = arith.divf %74, %75 : vector<16x96xf32>
    %77 = vector.extract_strided_slice %76 {offsets = [0, 0], sizes = [16, 32], strides = [1, 1]} : vector<16x96xf32> to vector<16x32xf32>
    %78 = vector.extract_strided_slice %76 {offsets = [0, 32], sizes = [16, 32], strides = [1, 1]} : vector<16x96xf32> to vector<16x32xf32>
    %79 = vector.extract_strided_slice %76 {offsets = [0, 64], sizes = [16, 32], strides = [1, 1]} : vector<16x96xf32> to vector<16x32xf32>
    %80 = vector.extract_strided_slice %70 {offsets = [0, 96], sizes = [16, 32], strides = [1, 1]} : vector<16x128xf32> to vector<16x32xf32>
    %81 = math.tanh %80 : vector<16x32xf32>
    %82 = arith.mulf %78, %60 : vector<16x32xf32>
    %83 = arith.mulf %77, %81 : vector<16x32xf32>
    %84 = arith.addf %82, %83 : vector<16x32xf32>
    %85 = math.tanh %84 : vector<16x32xf32>
    %86 = arith.mulf %79, %85 : vector<16x32xf32>
    %c3_i32 = arith.constant 3 : i32
    %c16_i32_27 = arith.constant 16 : i32
    %87 = arith.muli %c3_i32, %c16_i32_27 : i32
    %88 = tpu.assume_multiple %87, 16 : i32
    %89 = arith.index_cast %88 : i32 to index
    %c0_28 = arith.constant 0 : index
    %90 = vector.load %arg13[%89, %c0_28] : memref<128x128xbf16, #tpu.memory_space<vmem>>, vector<16x128xbf16>
    %91 = arith.truncf %86 : vector<16x32xf32> to vector<16x32xbf16>
    %cst_29 = arith.constant dense<0.000000e+00> : vector<16x128xf32>
    %92 = tpu.matmul %91, %12, %cst_29 {dimension_numbers = #tpu.dot_dimension_numbers<[1], [0], [0], [1], [0, 0, 1, 1], [], []>} : vector<16x32xbf16>, vector<32x128xbf16>, vector<16x128xf32> -> vector<16x128xf32>
    %93 = arith.extf %90 : vector<16x128xbf16> to vector<16x128xf32>
    %94 = arith.addf %93, %92 : vector<16x128xf32>
    %95 = vector.extract_strided_slice %94 {offsets = [0, 0], sizes = [16, 96], strides = [1, 1]} : vector<16x128xf32> to vector<16x96xf32>
    %96 = arith.negf %95 : vector<16x96xf32>
    %97 = math.exp %96 : vector<16x96xf32>
    %cst_30 = arith.constant 1.000000e+00 : f32
    %98 = vector.broadcast %cst_30 : f32 to vector<16x96xf32>
    %99 = arith.addf %98, %97 : vector<16x96xf32>
    %100 = arith.divf %98, %99 : vector<16x96xf32>
    %101 = vector.extract_strided_slice %100 {offsets = [0, 0], sizes = [16, 32], strides = [1, 1]} : vector<16x96xf32> to vector<16x32xf32>
    %102 = vector.extract_strided_slice %100 {offsets = [0, 32], sizes = [16, 32], strides = [1, 1]} : vector<16x96xf32> to vector<16x32xf32>
    %103 = vector.extract_strided_slice %100 {offsets = [0, 64], sizes = [16, 32], strides = [1, 1]} : vector<16x96xf32> to vector<16x32xf32>
    %104 = vector.extract_strided_slice %94 {offsets = [0, 96], sizes = [16, 32], strides = [1, 1]} : vector<16x128xf32> to vector<16x32xf32>
    %105 = math.tanh %104 : vector<16x32xf32>
    %106 = arith.mulf %102, %84 : vector<16x32xf32>
    %107 = arith.mulf %101, %105 : vector<16x32xf32>
    %108 = arith.addf %106, %107 : vector<16x32xf32>
    %109 = math.tanh %108 : vector<16x32xf32>
    %110 = arith.mulf %103, %109 : vector<16x32xf32>
    %c4_i32 = arith.constant 4 : i32
    %c16_i32_31 = arith.constant 16 : i32
    %111 = arith.muli %c4_i32, %c16_i32_31 : i32
    %112 = tpu.assume_multiple %111, 16 : i32
    %113 = arith.index_cast %112 : i32 to index
    %c0_32 = arith.constant 0 : index
    %114 = vector.load %arg13[%113, %c0_32] : memref<128x128xbf16, #tpu.memory_space<vmem>>, vector<16x128xbf16>
    %115 = arith.truncf %110 : vector<16x32xf32> to vector<16x32xbf16>
    %cst_33 = arith.constant dense<0.000000e+00> : vector<16x128xf32>
    %116 = tpu.matmul %115, %12, %cst_33 {dimension_numbers = #tpu.dot_dimension_numbers<[1], [0], [0], [1], [0, 0, 1, 1], [], []>} : vector<16x32xbf16>, vector<32x128xbf16>, vector<16x128xf32> -> vector<16x128xf32>
    %117 = arith.extf %114 : vector<16x128xbf16> to vector<16x128xf32>
    %118 = arith.addf %117, %116 : vector<16x128xf32>
    %119 = vector.extract_strided_slice %118 {offsets = [0, 0], sizes = [16, 96], strides = [1, 1]} : vector<16x128xf32> to vector<16x96xf32>
    %120 = arith.negf %119 : vector<16x96xf32>
    %121 = math.exp %120 : vector<16x96xf32>
    %cst_34 = arith.constant 1.000000e+00 : f32
    %122 = vector.broadcast %cst_34 : f32 to vector<16x96xf32>
    %123 = arith.addf %122, %121 : vector<16x96xf32>
    %124 = arith.divf %122, %123 : vector<16x96xf32>
    %125 = vector.extract_strided_slice %124 {offsets = [0, 0], sizes = [16, 32], strides = [1, 1]} : vector<16x96xf32> to vector<16x32xf32>
    %126 = vector.extract_strided_slice %124 {offsets = [0, 32], sizes = [16, 32], strides = [1, 1]} : vector<16x96xf32> to vector<16x32xf32>
    %127 = vector.extract_strided_slice %124 {offsets = [0, 64], sizes = [16, 32], strides = [1, 1]} : vector<16x96xf32> to vector<16x32xf32>
    %128 = vector.extract_strided_slice %118 {offsets = [0, 96], sizes = [16, 32], strides = [1, 1]} : vector<16x128xf32> to vector<16x32xf32>
    %129 = math.tanh %128 : vector<16x32xf32>
    %130 = arith.mulf %126, %108 : vector<16x32xf32>
    %131 = arith.mulf %125, %129 : vector<16x32xf32>
    %132 = arith.addf %130, %131 : vector<16x32xf32>
    %133 = math.tanh %132 : vector<16x32xf32>
    %134 = arith.mulf %127, %133 : vector<16x32xf32>
    %c5_i32 = arith.constant 5 : i32
    %c16_i32_35 = arith.constant 16 : i32
    %135 = arith.muli %c5_i32, %c16_i32_35 : i32
    %136 = tpu.assume_multiple %135, 16 : i32
    %137 = arith.index_cast %136 : i32 to index
    %c0_36 = arith.constant 0 : index
    %138 = vector.load %arg13[%137, %c0_36] : memref<128x128xbf16, #tpu.memory_space<vmem>>, vector<16x128xbf16>
    %139 = arith.truncf %134 : vector<16x32xf32> to vector<16x32xbf16>
    %cst_37 = arith.constant dense<0.000000e+00> : vector<16x128xf32>
    %140 = tpu.matmul %139, %12, %cst_37 {dimension_numbers = #tpu.dot_dimension_numbers<[1], [0], [0], [1], [0, 0, 1, 1], [], []>} : vector<16x32xbf16>, vector<32x128xbf16>, vector<16x128xf32> -> vector<16x128xf32>
    %141 = arith.extf %138 : vector<16x128xbf16> to vector<16x128xf32>
    %142 = arith.addf %141, %140 : vector<16x128xf32>
    %143 = vector.extract_strided_slice %142 {offsets = [0, 0], sizes = [16, 96], strides = [1, 1]} : vector<16x128xf32> to vector<16x96xf32>
    %144 = arith.negf %143 : vector<16x96xf32>
    %145 = math.exp %144 : vector<16x96xf32>
    %cst_38 = arith.constant 1.000000e+00 : f32
    %146 = vector.broadcast %cst_38 : f32 to vector<16x96xf32>
    %147 = arith.addf %146, %145 : vector<16x96xf32>
    %148 = arith.divf %146, %147 : vector<16x96xf32>
    %149 = vector.extract_strided_slice %148 {offsets = [0, 0], sizes = [16, 32], strides = [1, 1]} : vector<16x96xf32> to vector<16x32xf32>
    %150 = vector.extract_strided_slice %148 {offsets = [0, 32], sizes = [16, 32], strides = [1, 1]} : vector<16x96xf32> to vector<16x32xf32>
    %151 = vector.extract_strided_slice %148 {offsets = [0, 64], sizes = [16, 32], strides = [1, 1]} : vector<16x96xf32> to vector<16x32xf32>
    %152 = vector.extract_strided_slice %142 {offsets = [0, 96], sizes = [16, 32], strides = [1, 1]} : vector<16x128xf32> to vector<16x32xf32>
    %153 = math.tanh %152 : vector<16x32xf32>
    %154 = arith.mulf %150, %132 : vector<16x32xf32>
    %155 = arith.mulf %149, %153 : vector<16x32xf32>
    %156 = arith.addf %154, %155 : vector<16x32xf32>
    %157 = math.tanh %156 : vector<16x32xf32>
    %158 = arith.mulf %151, %157 : vector<16x32xf32>
    %c6_i32 = arith.constant 6 : i32
    %c16_i32_39 = arith.constant 16 : i32
    %159 = arith.muli %c6_i32, %c16_i32_39 : i32
    %160 = tpu.assume_multiple %159, 16 : i32
    %161 = arith.index_cast %160 : i32 to index
    %c0_40 = arith.constant 0 : index
    %162 = vector.load %arg13[%161, %c0_40] : memref<128x128xbf16, #tpu.memory_space<vmem>>, vector<16x128xbf16>
    %163 = arith.truncf %158 : vector<16x32xf32> to vector<16x32xbf16>
    %cst_41 = arith.constant dense<0.000000e+00> : vector<16x128xf32>
    %164 = tpu.matmul %163, %12, %cst_41 {dimension_numbers = #tpu.dot_dimension_numbers<[1], [0], [0], [1], [0, 0, 1, 1], [], []>} : vector<16x32xbf16>, vector<32x128xbf16>, vector<16x128xf32> -> vector<16x128xf32>
    %165 = arith.extf %162 : vector<16x128xbf16> to vector<16x128xf32>
    %166 = arith.addf %165, %164 : vector<16x128xf32>
    %167 = vector.extract_strided_slice %166 {offsets = [0, 0], sizes = [16, 96], strides = [1, 1]} : vector<16x128xf32> to vector<16x96xf32>
    %168 = arith.negf %167 : vector<16x96xf32>
    %169 = math.exp %168 : vector<16x96xf32>
    %cst_42 = arith.constant 1.000000e+00 : f32
    %170 = vector.broadcast %cst_42 : f32 to vector<16x96xf32>
    %171 = arith.addf %170, %169 : vector<16x96xf32>
    %172 = arith.divf %170, %171 : vector<16x96xf32>
    %173 = vector.extract_strided_slice %172 {offsets = [0, 0], sizes = [16, 32], strides = [1, 1]} : vector<16x96xf32> to vector<16x32xf32>
    %174 = vector.extract_strided_slice %172 {offsets = [0, 32], sizes = [16, 32], strides = [1, 1]} : vector<16x96xf32> to vector<16x32xf32>
    %175 = vector.extract_strided_slice %172 {offsets = [0, 64], sizes = [16, 32], strides = [1, 1]} : vector<16x96xf32> to vector<16x32xf32>
    %176 = vector.extract_strided_slice %166 {offsets = [0, 96], sizes = [16, 32], strides = [1, 1]} : vector<16x128xf32> to vector<16x32xf32>
    %177 = math.tanh %176 : vector<16x32xf32>
    %178 = arith.mulf %174, %156 : vector<16x32xf32>
    %179 = arith.mulf %173, %177 : vector<16x32xf32>
    %180 = arith.addf %178, %179 : vector<16x32xf32>
    %181 = math.tanh %180 : vector<16x32xf32>
    %182 = arith.mulf %175, %181 : vector<16x32xf32>
    %c7_i32 = arith.constant 7 : i32
    %c16_i32_43 = arith.constant 16 : i32
    %183 = arith.muli %c7_i32, %c16_i32_43 : i32
    %184 = tpu.assume_multiple %183, 16 : i32
    %185 = arith.index_cast %184 : i32 to index
    %c0_44 = arith.constant 0 : index
    %186 = vector.load %arg13[%185, %c0_44] : memref<128x128xbf16, #tpu.memory_space<vmem>>, vector<16x128xbf16>
    %187 = arith.truncf %182 : vector<16x32xf32> to vector<16x32xbf16>
    %cst_45 = arith.constant dense<0.000000e+00> : vector<16x128xf32>
    %188 = tpu.matmul %187, %12, %cst_45 {dimension_numbers = #tpu.dot_dimension_numbers<[1], [0], [0], [1], [0, 0, 1, 1], [], []>} : vector<16x32xbf16>, vector<32x128xbf16>, vector<16x128xf32> -> vector<16x128xf32>
    %189 = arith.extf %186 : vector<16x128xbf16> to vector<16x128xf32>
    %190 = arith.addf %189, %188 : vector<16x128xf32>
    %191 = vector.extract_strided_slice %190 {offsets = [0, 0], sizes = [16, 96], strides = [1, 1]} : vector<16x128xf32> to vector<16x96xf32>
    %192 = arith.negf %191 : vector<16x96xf32>
    %193 = math.exp %192 : vector<16x96xf32>
    %cst_46 = arith.constant 1.000000e+00 : f32
    %194 = vector.broadcast %cst_46 : f32 to vector<16x96xf32>
    %195 = arith.addf %194, %193 : vector<16x96xf32>
    %196 = arith.divf %194, %195 : vector<16x96xf32>
    %197 = vector.extract_strided_slice %196 {offsets = [0, 0], sizes = [16, 32], strides = [1, 1]} : vector<16x96xf32> to vector<16x32xf32>
    %198 = vector.extract_strided_slice %196 {offsets = [0, 32], sizes = [16, 32], strides = [1, 1]} : vector<16x96xf32> to vector<16x32xf32>
    %199 = vector.extract_strided_slice %196 {offsets = [0, 64], sizes = [16, 32], strides = [1, 1]} : vector<16x96xf32> to vector<16x32xf32>
    %200 = vector.extract_strided_slice %190 {offsets = [0, 96], sizes = [16, 32], strides = [1, 1]} : vector<16x128xf32> to vector<16x32xf32>
    %201 = math.tanh %200 : vector<16x32xf32>
    %202 = arith.mulf %198, %180 : vector<16x32xf32>
    %203 = arith.mulf %197, %201 : vector<16x32xf32>
    %204 = arith.addf %202, %203 : vector<16x32xf32>
    %205 = math.tanh %204 : vector<16x32xf32>
    %206 = arith.mulf %199, %205 : vector<16x32xf32>
    %c8_i32 = arith.constant 8 : i32
    %c0_47 = arith.constant 0 : index
    %c0_48 = arith.constant 0 : index
    %207 = vector.load %arg11[%c0_47, %c0_48] : memref<16x32xf32, #tpu.memory_space<vmem>>, vector<16x32xf32>
    tpu.vector_store %arg11[%c0_47, %c0_48], %206 {strides = array<i32>} : memref<16x32xf32, #tpu.memory_space<vmem>>, vector<16x32xf32>,
    %c0_49 = arith.constant 0 : index
    %c0_50 = arith.constant 0 : index
    %208 = vector.load %arg12[%c0_49, %c0_50] : memref<16x32xf32, #tpu.memory_space<vmem>>, vector<16x32xf32>
    tpu.vector_store %arg12[%c0_49, %c0_50], %204 {strides = array<i32>} : memref<16x32xf32, #tpu.memory_space<vmem>>, vector<16x32xf32>,
    %c0_i32_51 = arith.constant 0 : i32
    %209 = arith.cmpi eq, %arg1, %c0_i32_51 : i32
    %210 = arith.extui %209 : i1 to i32
    %c0_i32_52 = arith.constant 0 : i32
    %211 = arith.cmpi ne, %210, %c0_i32_52 : i32
    scf.if %211 {
      %cst_53 = arith.constant dense<0.000000e+00> : vector<16xf32>
      %212 = vector.multi_reduction <add>, %206, %cst_53 [1] : vector<16x32xf32> to vector<16xf32>
      %213 = vector.shape_cast %212 : vector<16xf32> to vector<16x1xf32>
      %cst_54 = arith.constant 3.200000e+01 : f32
      %214 = vector.broadcast %cst_54 : f32 to vector<16x1xf32>
      %215 = arith.divf %213, %214 : vector<16x1xf32>
      %216 = vector.broadcast %215 : vector<16x1xf32> to vector<16x32xf32>
      %217 = arith.subf %206, %216 : vector<16x32xf32>
      %218 = arith.mulf %217, %217 : vector<16x32xf32>
      %cst_55 = arith.constant dense<0.000000e+00> : vector<16xf32>
      %219 = vector.multi_reduction <add>, %218, %cst_55 [1] : vector<16x32xf32> to vector<16xf32>
      %220 = vector.shape_cast %219 : vector<16xf32> to vector<16x1xf32>
      %cst_56 = arith.constant 3.200000e+01 : f32
      %221 = vector.broadcast %cst_56 : f32 to vector<16x1xf32>
      %222 = arith.divf %220, %221 : vector<16x1xf32>
      %cst_57 = arith.constant 9.99999974E-6 : f32
      %223 = vector.broadcast %cst_57 : f32 to vector<16x1xf32>
      %224 = arith.addf %222, %223 : vector<16x1xf32>
      %225 = math.rsqrt %224 : vector<16x1xf32>
      %226 = vector.broadcast %225 : vector<16x1xf32> to vector<16x32xf32>
      %227 = arith.mulf %217, %226 : vector<16x32xf32>
      %c0_58 = arith.constant 0 : index
      %c0_59 = arith.constant 0 : index
      %228 = vector.load %arg6[%c0_58, %c0_59] : memref<1x32xf32, #tpu.memory_space<vmem>>, vector<1x32xf32>
      %229 = vector.broadcast %228 : vector<1x32xf32> to vector<16x32xf32>
      %230 = arith.mulf %227, %229 : vector<16x32xf32>
      %c0_60 = arith.constant 0 : index
      %c0_61 = arith.constant 0 : index
      %231 = vector.load %arg7[%c0_60, %c0_61] : memref<1x32xf32, #tpu.memory_space<vmem>>, vector<1x32xf32>
      %232 = vector.broadcast %231 : vector<1x32xf32> to vector<16x32xf32>
      %233 = arith.addf %230, %232 : vector<16x32xf32>
      %c0_62 = arith.constant 0 : index
      %c0_63 = arith.constant 0 : index
      %234 = vector.load %arg8[%c0_62, %c0_63] : memref<1x32xf32, #tpu.memory_space<vmem>>, vector<1x32xf32>
      %235 = vector.broadcast %234 : vector<1x32xf32> to vector<16x32xf32>
      %236 = arith.mulf %233, %235 : vector<16x32xf32>
      %cst_64 = arith.constant dense<0.000000e+00> : vector<16xf32>
      %237 = vector.multi_reduction <add>, %236, %cst_64 [1] : vector<16x32xf32> to vector<16xf32>
      %238 = vector.shape_cast %237 : vector<16xf32> to vector<16x1xf32>
      %c0_65 = arith.constant 0 : index
      %c0_66 = arith.constant 0 : index
      %239 = memref.load %arg9[%c0_65, %c0_66] : memref<1x1xf32, #tpu.memory_space<smem>>
      %240 = vector.broadcast %239 : f32 to vector<16x1xf32>
      %241 = arith.addf %238, %240 : vector<16x1xf32>
      %242 = arith.negf %241 : vector<16x1xf32>
      %243 = math.exp %242 : vector<16x1xf32>
      %cst_67 = arith.constant 1.000000e+00 : f32
      %244 = vector.broadcast %cst_67 : f32 to vector<16x1xf32>
      %245 = arith.addf %244, %243 : vector<16x1xf32>
      %246 = arith.divf %244, %245 : vector<16x1xf32>
      %c0_68 = arith.constant 0 : index
      %c0_69 = arith.constant 0 : index
      %247 = vector.load %arg10[%c0_68, %c0_69] : memref<16x1xf32, #tpu.memory_space<vmem>>, vector<16x1xf32>
      tpu.vector_store %arg10[%c0_68, %c0_69], %246 {strides = array<i32>} : memref<16x1xf32, #tpu.memory_space<vmem>>, vector<16x1xf32>,
    } else {
    }
    return
  }
  func.func @transform_0(%arg0: i32, %arg1: i32) -> (i32, i32, i32) {
    %c0_i32 = arith.constant 0 : i32
    %c0_i32_0 = arith.constant 0 : i32
    return %arg1, %arg0, %c0_i32 : i32, i32, i32
  }
  func.func @transform_1(%arg0: i32, %arg1: i32) -> (i32, i32) {
    %c0_i32 = arith.constant 0 : i32
    %c0_i32_0 = arith.constant 0 : i32
    %c0_i32_1 = arith.constant 0 : i32
    return %c0_i32, %c0_i32_0 : i32, i32
  }
  func.func @transform_2(%arg0: i32, %arg1: i32) -> (i32, i32) {
    %c0_i32 = arith.constant 0 : i32
    %c0_i32_0 = arith.constant 0 : i32
    %c0_i32_1 = arith.constant 0 : i32
    return %c0_i32, %c0_i32_0 : i32, i32
  }
  func.func @transform_3(%arg0: i32, %arg1: i32) -> (i32, i32) {
    %c0_i32 = arith.constant 0 : i32
    %c0_i32_0 = arith.constant 0 : i32
    %c0_i32_1 = arith.constant 0 : i32
    return %c0_i32, %c0_i32_0 : i32, i32
  }
  func.func @transform_4(%arg0: i32, %arg1: i32) -> (i32, i32) {
    %c0_i32 = arith.constant 0 : i32
    %c0_i32_0 = arith.constant 0 : i32
    %c0_i32_1 = arith.constant 0 : i32
    return %c0_i32, %c0_i32_0 : i32, i32
  }
  func.func @transform_5(%arg0: i32, %arg1: i32) -> (i32, i32) {
    %c0_i32 = arith.constant 0 : i32
    %c0_i32_0 = arith.constant 0 : i32
    %c0_i32_1 = arith.constant 0 : i32
    return %c0_i32, %c0_i32_0 : i32, i32
  }
  func.func @transform_6(%arg0: i32, %arg1: i32) -> (i32, i32) {
    %c0_i32 = arith.constant 0 : i32
    %c0_i32_0 = arith.constant 0 : i32
    %c0_i32_1 = arith.constant 0 : i32
    return %c0_i32, %c0_i32_0 : i32, i32
  }
  func.func @transform_7(%arg0: i32, %arg1: i32) -> (i32, i32) {
    %c0_i32 = arith.constant 0 : i32
    %c0_i32_0 = arith.constant 0 : i32
    %c0_i32_1 = arith.constant 0 : i32
    return %c0_i32, %c0_i32_0 : i32, i32
  }
  func.func @transform_8(%arg0: i32, %arg1: i32) -> (i32, i32) {
    %c0_i32 = arith.constant 0 : i32
    %c0_i32_0 = arith.constant 0 : i32
    return %arg0, %c0_i32 : i32, i32
  }
}

</mosaic_0001>

<llo_original>
// kernel: lstm_forward.1
$region0: #{lstm_forward.1}
  #allocation0 [shape = 'u32[]', space=smem, size = 0x4, offset = 0x4, fixed_abs, tag = 'smem constant byte address 0x4 - core index']
  #allocation1 [shape = 'u32[144,128]{1,0:T(1,128)}', space=vmem, size = 0x12000, scoped, tag = 'internal scratch']
  #allocation2 [shape = 'f32[16,32]{1,0:T(8,128)}', space=vmem, size = 0x2000, scoped, tag = 'scratch operand']
  #allocation3 [shape = 'f32[16,32]{1,0:T(8,128)}', space=vmem, size = 0x2000, scoped, tag = 'scratch operand']
  #allocation4 [shape = 'bf16[128,128]{1,0:T(16,128)(2,1)}', space=vmem, size = 0x8000, scoped, tag = 'scratch operand']
  #allocation5 [shape = 'f32[1,1]{1,0:T(1,128)S(6)}', space=smem, size = 0x200, scoped, tag = 'scoped memory for lstm_forward.1']
  %s0 = inlined_call_operand.vmem [shape: bf16[8,16,16], index: 0, kind: input, shape index: {}]
  %s1 = inlined_call_operand.vmem [shape: bf16[16,128], index: 1, kind: input, shape index: {}]
  %s2 = inlined_call_operand.vmem [shape: bf16[32,128], index: 2, kind: input, shape index: {}]
  %s3 = inlined_call_operand.vmem [shape: f32[1,128], index: 3, kind: input, shape index: {}]
  %s4 = inlined_call_operand.vmem [shape: f32[1,32], index: 4, kind: input, shape index: {}]
  %s5 = inlined_call_operand.vmem [shape: f32[1,32], index: 5, kind: input, shape index: {}]
  %s6 = inlined_call_operand.vmem [shape: f32[1,32], index: 6, kind: input, shape index: {}]
  %s7 = inlined_call_operand.<no memory space> [shape: f32[1,1], index: 7, kind: input, shape index: {}]
  %s8 = inlined_call_operand.vmem [shape: f32[16,1], index: 8, kind: output, shape index: {}]
  %s9 = sld [smem:[#allocation0]]
  $region50: #{lstm_forward.1} parent=0
    _
  %s11 = ssub.s32 1, %s9
  %s12 = scalar_select 0, %s11, %s9
  %13 = sst [smem:[#allocation5]] %s7
  // Predicated region
  $region2: #{lstm_forward.1} parent=0 // pred_check
    _
  $region3: #{lstm_forward.1} parent=0 // pred_check_branch
    %15 = sbr.rel (0) target = $region5
  $region4: #{lstm_forward.1} parent=0 // pred_region
    _
  $region5: #{lstm_forward.1} parent=0 // pred_fallthru
    _
  // Predicated region
  $region6: #{lstm_forward.1} parent=0 // pred_check
    _
  $region7: #{lstm_forward.1} parent=0 // pred_check_branch
    %17 = sbr.rel (0) target = $region9
  $region8: #{lstm_forward.1} parent=0 // pred_region
    _
  $region9: #{lstm_forward.1} parent=0 // pred_fallthru
    _
  // Predicated region
  $region10: #{lstm_forward.1} parent=0 // pred_check
    _
  $region11: #{lstm_forward.1} parent=0 // pred_check_branch
    %19 = sbr.rel (0) target = $region13
  $region12: #{lstm_forward.1} parent=0 // pred_region
    _
  $region13: #{lstm_forward.1} parent=0 // pred_fallthru
    _
  // Predicated region
  $region14: #{lstm_forward.1} parent=0 // pred_check
    _
  $region15: #{lstm_forward.1} parent=0 // pred_check_branch
    %21 = sbr.rel (0) target = $region17
  $region16: #{lstm_forward.1} parent=0 // pred_region
    _
  $region17: #{lstm_forward.1} parent=0 // pred_fallthru
    _
  // Predicated region
  $region18: #{lstm_forward.1} parent=0 // pred_check
    _
  $region19: #{lstm_forward.1} parent=0 // pred_check_branch
    %23 = sbr.rel (0) target = $region21
  $region20: #{lstm_forward.1} parent=0 // pred_region
    _
  $region21: #{lstm_forward.1} parent=0 // pred_fallthru
    _
  // Predicated region
  $region22: #{lstm_forward.1} parent=0 // pred_check
    _
  $region23: #{lstm_forward.1} parent=0 // pred_check_branch
    %25 = sbr.rel (0) target = $region25
  $region24: #{lstm_forward.1} parent=0 // pred_region
    _
  $region25: #{lstm_forward.1} parent=0 // pred_fallthru
    _
  // Predicated region
  $region26: #{lstm_forward.1} parent=0 // pred_check
    _
  $region27: #{lstm_forward.1} parent=0 // pred_check_branch
    %27 = sbr.rel (0) target = $region29
  $region28: #{lstm_forward.1} parent=0 // pred_region
    _
  $region29: #{lstm_forward.1} parent=0 // pred_fallthru
    _
  // Predicated region
  $region30: #{lstm_forward.1} parent=0 // pred_check
    _
  $region31: #{lstm_forward.1} parent=0 // pred_check_branch
    %29 = sbr.rel (0) target = $region33
  $region32: #{lstm_forward.1} parent=0 // pred_region
    _
  $region33: #{lstm_forward.1} parent=0 // pred_fallthru
    _
  %p31 = scmp.eq.s32.totalorder 0, 0
  // Predicated region
  $region34: #{lstm_forward.1} parent=0 // pred_check
    %p32 = pneg %p31
  $region35: #{lstm_forward.1} parent=0 // pred_check_branch
    %34 = sbr.rel (%p32) target = $region37
  $region36: #{lstm_forward.1} parent=0 // pred_region
    %vm35 = vcmask 261120
    %36 = vst.msk [vmem:[#allocation2] sm:$0xff] %vm35, 0.0
    %37 = vst.msk [vmem:[#allocation2 + $0x8] sm:$0xff] %vm35, 0.0
    %38 = vst.msk [vmem:[#allocation3] sm:$0xff] %vm35, 0.0
    %39 = vst.msk [vmem:[#allocation3 + $0x8] sm:$0xff] %vm35, 0.0
  $region37: #{lstm_forward.1} parent=0 // pred_fallthru
    _
  %v40 = vld [vmem:[%s0] sm:$0xf]
  %v41 = vld [vmem:[%s0 + $0x4] sm:$0xf]
  %v42 = vld [vmem:[%s0 + $0x8] sm:$0xf]
  %v43 = vld [vmem:[%s0 + $0xc] sm:$0xf]
  %v44 = vld [vmem:[%s0 + $0x10] sm:$0xf]
  %v45 = vld [vmem:[%s0 + $0x14] sm:$0xf]
  %v46 = vld [vmem:[%s0 + $0x18] sm:$0xf]
  %v47 = vld [vmem:[%s0 + $0x1c] sm:$0xf]
  %v48 = vld [vmem:[%s0 + $0x20] sm:$0xf]
  %v49 = vld [vmem:[%s0 + $0x24] sm:$0xf]
  %v50 = vld [vmem:[%s0 + $0x28] sm:$0xf]
  %v51 = vld [vmem:[%s0 + $0x2c] sm:$0xf]
  %v52 = vld [vmem:[%s0 + $0x30] sm:$0xf]
  %v53 = vld [vmem:[%s0 + $0x34] sm:$0xf]
  %v54 = vld [vmem:[%s0 + $0x38] sm:$0xf]
  %v55 = vld [vmem:[%s0 + $0x3c] sm:$0xf]
  %v56 = vld [vmem:[%s1] sm:$0xf]
  %v57 = vld [vmem:[%s1 + $0x4] sm:$0xf]
  %v58 = vld [vmem:[%s3] sm:$0x1]
  %v60 = vlaneseq
  %v61 = vshrl.u32 %v60, 7
  %v62 = vsub.s32 0, %v61
  %v63 = vrot.slane %v58, %v62
  %v81 = vunpack.c.l.b16 %v40
  %v82 = vunpack.c.l.b16 %v41
  %v83 = vunpack.c.l.b16 %v42
  %v84 = vunpack.c.l.b16 %v43
  %v85 = vunpack.c.l.b16 %v44
  %v86 = vunpack.c.l.b16 %v45
  %v87 = vunpack.c.l.b16 %v46
  %v88 = vunpack.c.l.b16 %v47
  %v89 = vunpack.c.l.b16 %v48
  %v90 = vunpack.c.l.b16 %v49
  %v91 = vunpack.c.l.b16 %v50
  %v92 = vunpack.c.l.b16 %v51
  %v93 = vunpack.c.l.b16 %v52
  %v94 = vunpack.c.l.b16 %v53
  %v95 = vunpack.c.l.b16 %v54
  %v96 = vunpack.c.l.b16 %v55
  %v97 = vpack.c.b16 %v82, %v81
  %v98 = vpack.c.b16 %v84, %v83
  %v99 = vpack.c.b16 %v86, %v85
  %v100 = vpack.c.b16 %v88, %v87
  %v101 = vpack.c.b16 %v90, %v89
  %v102 = vpack.c.b16 %v92, %v91
  %v103 = vpack.c.b16 %v94, %v93
  %v104 = vpack.c.b16 %v96, %v95
  %v107 = vunpack.c.l.b16 %v56
  %v108 = vunpack.c.l.b16 %v57
  %v109 = vpack.c.b16 %v108, %v107
  %vm111 = vcmask 130048
  %v113 = vsel %vm111, %v97, 0
  %v116 = vsel %vm111, %v98, 0
  %v119 = vsel %vm111, %v99, 0
  %v122 = vsel %vm111, %v100, 0
  %v125 = vsel %vm111, %v101, 0
  %v128 = vsel %vm111, %v102, 0
  %v131 = vsel %vm111, %v103, 0
  %v134 = vsel %vm111, %v104, 0
  %136 = vmatprep.subr.bf16.mxu0 0
  %137 = vmatpush1.bf16.msra.mxu0 %v109
  %138 = vmatprep.subr.bf16.mxu0 0
  %139 = vmatpush1.bf16.msra.mxu0 0
  %140 = vmatprep.subr.bf16.mxu0 0
  %141 = vmatpush1.bf16.msra.mxu0 0
  %142 = vmatprep.subr.bf16.mxu0 0
  %143 = vmatpush1.bf16.msra.mxu0 0
  %144 = vmatprep.subr.bf16.mxu0 0
  %145 = vmatpush1.bf16.msra.mxu0 0
  %146 = vmatprep.subr.bf16.mxu0 0
  %147 = vmatpush1.bf16.msra.mxu0 0
  %148 = vmatprep.subr.bf16.mxu0 0
  %149 = vmatpush1.bf16.msra.mxu0 0
  %150 = vmatprep.subr.bf16.mxu0 0
  %151 = vmatpush1.bf16.msra.mxu0 0
  %152 = vmatprep.subr.bf16.mxu0 0
  %153 = vmatpush1.bf16.msra.mxu0 0
  %154 = vmatprep.subr.bf16.mxu0 0
  %155 = vmatpush1.bf16.msra.mxu0 0
  %156 = vmatprep.subr.bf16.mxu0 0
  %157 = vmatpush1.bf16.msra.mxu0 0
  %158 = vmatprep.subr.bf16.mxu0 0
  %159 = vmatpush1.bf16.msra.mxu0 0
  %160 = vmatprep.subr.bf16.mxu0 0
  %161 = vmatpush1.bf16.msra.mxu0 0
  %162 = vmatprep.subr.bf16.mxu0 0
  %163 = vmatpush1.bf16.msra.mxu0 0
  %164 = vmatprep.subr.bf16.mxu0 0
  %165 = vmatpush1.bf16.msra.mxu0 0
  %166 = vmatprep.subr.bf16.mxu0 0
  %167 = vmatpush1.bf16.msra.mxu0 0
  %168 = vmatprep.mubr.bf16.mxu0 0
  %169 = vmatmul.mubr.bf16.gmra.mrb[0].mxu0 %v113
  %v170 = vpop.f32.mrb[0].mxu0
  %v171 = vadd.f32 %v63, %v170
  %v172 = vpop.f32.mrb[0].mxu0
  %v173 = vpop.f32.mrb[0].mxu0
  %v174 = vadd.f32 %v63, %v173
  %v175 = vpop.f32.mrb[0].mxu0
  %176 = vmatprep.mubr.bf16.mxu0 0
  %177 = vmatmul.mubr.bf16.gmra.mrb[0].mxu0 %v116
  %v178 = vpop.f32.mrb[0].mxu0
  %v179 = vadd.f32 %v63, %v178
  %v180 = vpop.f32.mrb[0].mxu0
  %v181 = vpop.f32.mrb[0].mxu0
  %v182 = vadd.f32 %v63, %v181
  %v183 = vpop.f32.mrb[0].mxu0
  %184 = vmatprep.mubr.bf16.mxu0 0
  %185 = vmatmul.mubr.bf16.gmra.mrb[0].mxu0 %v119
  %v186 = vpop.f32.mrb[0].mxu0
  %v187 = vadd.f32 %v63, %v186
  %v188 = vpop.f32.mrb[0].mxu0
  %v189 = vpop.f32.mrb[0].mxu0
  %v190 = vadd.f32 %v63, %v189
  %v191 = vpop.f32.mrb[0].mxu0
  %192 = vmatprep.mubr.bf16.mxu0 0
  %193 = vmatmul.mubr.bf16.gmra.mrb[0].mxu0 %v122
  %v194 = vpop.f32.mrb[0].mxu0
  %v195 = vadd.f32 %v63, %v194
  %v196 = vpop.f32.mrb[0].mxu0
  %v197 = vpop.f32.mrb[0].mxu0
  %v198 = vadd.f32 %v63, %v197
  %v199 = vpop.f32.mrb[0].mxu0
  %200 = vmatprep.mubr.bf16.mxu0 0
  %201 = vmatmul.mubr.bf16.gmra.mrb[0].mxu0 %v125
  %v202 = vpop.f32.mrb[0].mxu0
  %v203 = vadd.f32 %v63, %v202
  %v204 = vpop.f32.mrb[0].mxu0
  %v205 = vpop.f32.mrb[0].mxu0
  %v206 = vadd.f32 %v63, %v205
  %v207 = vpop.f32.mrb[0].mxu0
  %208 = vmatprep.mubr.bf16.mxu0 0
  %209 = vmatmul.mubr.bf16.gmra.mrb[0].mxu0 %v128
  %v210 = vpop.f32.mrb[0].mxu0
  %v211 = vadd.f32 %v63, %v210
  %v212 = vpop.f32.mrb[0].mxu0
  %v213 = vpop.f32.mrb[0].mxu0
  %v214 = vadd.f32 %v63, %v213
  %v215 = vpop.f32.mrb[0].mxu0
  %216 = vmatprep.mubr.bf16.mxu0 0
  %217 = vmatmul.mubr.bf16.gmra.mrb[0].mxu0 %v131
  %v218 = vpop.f32.mrb[0].mxu0
  %v219 = vadd.f32 %v63, %v218
  %v220 = vpop.f32.mrb[0].mxu0
  %v221 = vpop.f32.mrb[0].mxu0
  %v222 = vadd.f32 %v63, %v221
  %v223 = vpop.f32.mrb[0].mxu0
  %224 = vmatprep.mubr.bf16.mxu0 0
  %225 = vmatmul.mubr.bf16.gmra.mrb[0].mxu0 %v134
  %v226 = vpop.f32.mrb[0].mxu0
  %v227 = vadd.f32 %v63, %v226
  %v228 = vpop.f32.mrb[0].mxu0
  %v229 = vpop.f32.mrb[0].mxu0
  %v230 = vadd.f32 %v63, %v229
  %v231 = vpop.f32.mrb[0].mxu0
  %232 = vdwg.mxu0
  %v233 = vpack.c.bf16 %v174, %v171
  %v234 = vpack.c.bf16 %v182, %v179
  %v235 = vpack.c.bf16 %v190, %v187
  %v236 = vpack.c.bf16 %v198, %v195
  %v237 = vpack.c.bf16 %v206, %v203
  %v238 = vpack.c.bf16 %v214, %v211
  %v239 = vpack.c.bf16 %v222, %v219
  %v240 = vpack.c.bf16 %v230, %v227
  %241 = vst [vmem:[#allocation4] sm:$0xff] %v233
  %242 = vst [vmem:[#allocation4 + $0x8] sm:$0xff] %v234
  %243 = vst [vmem:[#allocation4 + $0x10] sm:$0xff] %v235
  %244 = vst [vmem:[#allocation4 + $0x18] sm:$0xff] %v236
  %245 = vst [vmem:[#allocation4 + $0x20] sm:$0xff] %v237
  %246 = vst [vmem:[#allocation4 + $0x28] sm:$0xff] %v238
  %247 = vst [vmem:[#allocation4 + $0x30] sm:$0xff] %v239
  %248 = vst [vmem:[#allocation4 + $0x38] sm:$0xff] %v240
  %v249 = vld [vmem:[%s2] sm:$0xf]
  %v250 = vld [vmem:[%s2 + $0x4] sm:$0xf]
  %v251 = vld [vmem:[%s2 + $0x8] sm:$0xf]
  %v252 = vld [vmem:[%s2 + $0xc] sm:$0xf]
  %v253 = vld [vmem:[#allocation2] sm:$0xff]
  %v254 = vld [vmem:[#allocation2 + $0x8] sm:$0xff]
  %v255 = vld [vmem:[#allocation3] sm:$0xff]
  %v256 = vld [vmem:[#allocation3 + $0x8] sm:$0xff]
  %v257 = vld [vmem:[#allocation4] sm:$0xff]
  %v258 = vpack.c.bf16 %v254, %v253
  %v263 = vunpack.c.l.b16 %v249
  %v264 = vunpack.c.l.b16 %v250
  %v265 = vunpack.c.l.b16 %v251
  %v266 = vunpack.c.l.b16 %v252
  %v267 = vpack.c.b16 %v264, %v263
  %v268 = vpack.c.b16 %v266, %v265
  %vm271 = vcmask 261120
  %v273 = vsel %vm271, %v258, 0
  %275 = vmatprep.subr.bf16.mxu0 0
  %276 = vmatpush1.bf16.msra.mxu0 %v267
  %277 = vmatprep.subr.bf16.mxu0 0
  %278 = vmatpush1.bf16.msra.mxu0 %v268
  %279 = vmatprep.subr.bf16.mxu0 0
  %280 = vmatpush1.bf16.msra.mxu0 0
  %281 = vmatprep.subr.bf16.mxu0 0
  %282 = vmatpush1.bf16.msra.mxu0 0
  %283 = vmatprep.subr.bf16.mxu0 0
  %284 = vmatpush1.bf16.msra.mxu0 0
  %285 = vmatprep.subr.bf16.mxu0 0
  %286 = vmatpush1.bf16.msra.mxu0 0
  %287 = vmatprep.subr.bf16.mxu0 0
  %288 = vmatpush1.bf16.msra.mxu0 0
  %289 = vmatprep.subr.bf16.mxu0 0
  %290 = vmatpush1.bf16.msra.mxu0 0
  %291 = vmatprep.subr.bf16.mxu0 0
  %292 = vmatpush1.bf16.msra.mxu0 0
  %293 = vmatprep.subr.bf16.mxu0 0
  %294 = vmatpush1.bf16.msra.mxu0 0
  %295 = vmatprep.subr.bf16.mxu0 0
  %296 = vmatpush1.bf16.msra.mxu0 0
  %297 = vmatprep.subr.bf16.mxu0 0
  %298 = vmatpush1.bf16.msra.mxu0 0
  %299 = vmatprep.subr.bf16.mxu0 0
  %300 = vmatpush1.bf16.msra.mxu0 0
  %301 = vmatprep.subr.bf16.mxu0 0
  %302 = vmatpush1.bf16.msra.mxu0 0
  %303 = vmatprep.subr.bf16.mxu0 0
  %304 = vmatpush1.bf16.msra.mxu0 0
  %305 = vmatprep.subr.bf16.mxu0 0
  %306 = vmatpush1.bf16.msra.mxu0 0
  %307 = vmatprep.mubr.bf16.mxu0 0
  %308 = vmatmul.mubr.bf16.gmra.mrb[0].mxu0 %v273
  %v309 = vpop.f32.mrb[0].mxu0
  %v310 = vadd.f32 0.0, %v309
  %v311 = vpop.f32.mrb[0].mxu0
  %v312 = vpop.f32.mrb[0].mxu0
  %v313 = vadd.f32 0.0, %v312
  %v314 = vpop.f32.mrb[0].mxu0
  %315 = vdwg.mxu0
  %v316 = vunpack.c.l.bf16 %v257
  %v317 = vunpack.c.h.bf16 %v257
  %v318 = vadd.f32 %v316, %v310
  %v319 = vadd.f32 %v317, %v313
  %v320 = vxor.u32 %v318, 2147483648
  %v321 = vxor.u32 %v319, 2147483648
  %v322 = vmul.f32 %v320, 1.442695
  %v323 = vpow.pop %v322
  %v324 = vmul.f32 %v321, 1.442695
  %v325 = vpow.pop %v324
  %v326 = vadd.f32 %v323, 1.0
  %v327 = vadd.f32 %v325, 1.0
  %v328 = vrcp.pop %v326
  %v329 = vmul.f32 1.0, %v328
  %v330 = vrcp.pop %v327
  %v331 = vmul.f32 1.0, %v330
  %v332 = vtanh.pop %v318
  %v333 = vtanh.pop %v319
  %336 = vrot.lane.b32.xlu0 %v255, 32
  %v337 = vpop.permute.xlu0 %336
  %338 = vrot.lane.b32.xlu0 %v256, 32
  %v339 = vpop.permute.xlu0 %338
  %v342 = vmul.f32 %v329, %v337
  %v343 = vmul.f32 %v331, %v339
  %346 = vrot.lane.b32.xlu0 %v332, 32
  %v347 = vpop.permute.xlu0 %346
  %348 = vrot.lane.b32.xlu0 %v333, 32
  %v349 = vpop.permute.xlu0 %348
  %v352 = vmul.f32 %v329, %v347
  %v353 = vmul.f32 %v331, %v349
  %356 = vrot.lane.b32.xlu0 %v352, 32
  %v357 = vpop.permute.xlu0 %356
  %358 = vrot.lane.b32.xlu0 %v353, 32
  %v359 = vpop.permute.xlu0 %358
  %v362 = vadd.f32 %v342, %v357
  %v363 = vadd.f32 %v343, %v359
  %v364 = vtanh.pop %v362
  %v365 = vtanh.pop %v363
  %368 = vrot.lane.b32.xlu0 %v364, 32
  %v369 = vpop.permute.xlu0 %368
  %370 = vrot.lane.b32.xlu0 %v365, 32
  %v371 = vpop.permute.xlu0 %370
  %v374 = vmul.f32 %v329, %v369
  %v375 = vmul.f32 %v331, %v371
  %s376 = scalar_lea.vmem [#allocation4], 8
  %v377 = vld [vmem:[%s376] sm:$0xff]
  %v378 = vpack.c.bf16 %v375, %v374
  %380 = vrot.lane.b32.xlu0 %v378, 64
  %v381 = vpop.permute.xlu0 %380
  %v383 = vsel %vm271, %v381, 0
  %385 = vmatprep.subr.bf16.mxu0 0
  %386 = vmatpush1.bf16.msra.mxu0 %v267
  %387 = vmatprep.subr.bf16.mxu0 0
  %388 = vmatpush1.bf16.msra.mxu0 %v268
  %389 = vmatprep.subr.bf16.mxu0 0
  %390 = vmatpush1.bf16.msra.mxu0 0
  %391 = vmatprep.subr.bf16.mxu0 0
  %392 = vmatpush1.bf16.msra.mxu0 0
  %393 = vmatprep.subr.bf16.mxu0 0
  %394 = vmatpush1.bf16.msra.mxu0 0
  %395 = vmatprep.subr.bf16.mxu0 0
  %396 = vmatpush1.bf16.msra.mxu0 0
  %397 = vmatprep.subr.bf16.mxu0 0
  %398 = vmatpush1.bf16.msra.mxu0 0
  %399 = vmatprep.subr.bf16.mxu0 0
  %400 = vmatpush1.bf16.msra.mxu0 0
  %401 = vmatprep.subr.bf16.mxu0 0
  %402 = vmatpush1.bf16.msra.mxu0 0
  %403 = vmatprep.subr.bf16.mxu0 0
  %404 = vmatpush1.bf16.msra.mxu0 0
  %405 = vmatprep.subr.bf16.mxu0 0
  %406 = vmatpush1.bf16.msra.mxu0 0
  %407 = vmatprep.subr.bf16.mxu0 0
  %408 = vmatpush1.bf16.msra.mxu0 0
  %409 = vmatprep.subr.bf16.mxu0 0
  %410 = vmatpush1.bf16.msra.mxu0 0
  %411 = vmatprep.subr.bf16.mxu0 0
  %412 = vmatpush1.bf16.msra.mxu0 0
  %413 = vmatprep.subr.bf16.mxu0 0
  %414 = vmatpush1.bf16.msra.mxu0 0
  %415 = vmatprep.subr.bf16.mxu0 0
  %416 = vmatpush1.bf16.msra.mxu0 0
  %417 = vmatprep.mubr.bf16.mxu0 0
  %418 = vmatmul.mubr.bf16.gmra.mrb[0].mxu0 %v383
  %v419 = vpop.f32.mrb[0].mxu0
  %v420 = vadd.f32 0.0, %v419
  %v421 = vpop.f32.mrb[0].mxu0
  %v422 = vpop.f32.mrb[0].mxu0
  %v423 = vadd.f32 0.0, %v422
  %v424 = vpop.f32.mrb[0].mxu0
  %425 = vdwg.mxu0
  %v426 = vunpack.c.l.bf16 %v377
  %v427 = vunpack.c.h.bf16 %v377
  %v428 = vadd.f32 %v426, %v420
  %v429 = vadd.f32 %v427, %v423
  %v430 = vxor.u32 %v428, 2147483648
  %v431 = vxor.u32 %v429, 2147483648
  %v432 = vmul.f32 %v430, 1.442695
  %v433 = vpow.pop %v432
  %v434 = vmul.f32 %v431, 1.442695
  %v435 = vpow.pop %v434
  %v436 = vadd.f32 %v433, 1.0
  %v437 = vadd.f32 %v435, 1.0
  %v438 = vrcp.pop %v436
  %v439 = vmul.f32 1.0, %v438
  %v440 = vrcp.pop %v437
  %v441 = vmul.f32 1.0, %v440
  %v442 = vtanh.pop %v428
  %v443 = vtanh.pop %v429
  %v444 = vmul.f32 %v439, %v362
  %v445 = vmul.f32 %v441, %v363
  %448 = vrot.lane.b32.xlu0 %v442, 32
  %v449 = vpop.permute.xlu0 %448
  %450 = vrot.lane.b32.xlu0 %v443, 32
  %v451 = vpop.permute.xlu0 %450
  %v454 = vmul.f32 %v439, %v449
  %v455 = vmul.f32 %v441, %v451
  %458 = vrot.lane.b32.xlu0 %v454, 32
  %v459 = vpop.permute.xlu0 %458
  %460 = vrot.lane.b32.xlu0 %v455, 32
  %v461 = vpop.permute.xlu0 %460
  %v464 = vadd.f32 %v444, %v459
  %v465 = vadd.f32 %v445, %v461
  %v466 = vtanh.pop %v464
  %v467 = vtanh.pop %v465
  %470 = vrot.lane.b32.xlu0 %v466, 32
  %v471 = vpop.permute.xlu0 %470
  %472 = vrot.lane.b32.xlu0 %v467, 32
  %v473 = vpop.permute.xlu0 %472
  %v476 = vmul.f32 %v439, %v471
  %v477 = vmul.f32 %v441, %v473
  %s478 = scalar_lea.vmem [#allocation4], 16
  %v479 = vld [vmem:[%s478] sm:$0xff]
  %v480 = vpack.c.bf16 %v477, %v476
  %482 = vrot.lane.b32.xlu0 %v480, 64
  %v483 = vpop.permute.xlu0 %482
  %v485 = vsel %vm271, %v483, 0
  %487 = vmatprep.subr.bf16.mxu0 0
  %488 = vmatpush1.bf16.msra.mxu0 %v267
  %489 = vmatprep.subr.bf16.mxu0 0
  %490 = vmatpush1.bf16.msra.mxu0 %v268
  %491 = vmatprep.subr.bf16.mxu0 0
  %492 = vmatpush1.bf16.msra.mxu0 0
  %493 = vmatprep.subr.bf16.mxu0 0
  %494 = vmatpush1.bf16.msra.mxu0 0
  %495 = vmatprep.subr.bf16.mxu0 0
  %496 = vmatpush1.bf16.msra.mxu0 0
  %497 = vmatprep.subr.bf16.mxu0 0
  %498 = vmatpush1.bf16.msra.mxu0 0
  %499 = vmatprep.subr.bf16.mxu0 0
  %500 = vmatpush1.bf16.msra.mxu0 0
  %501 = vmatprep.subr.bf16.mxu0 0
  %502 = vmatpush1.bf16.msra.mxu0 0
  %503 = vmatprep.subr.bf16.mxu0 0
  %504 = vmatpush1.bf16.msra.mxu0 0
  %505 = vmatprep.subr.bf16.mxu0 0
  %506 = vmatpush1.bf16.msra.mxu0 0
  %507 = vmatprep.subr.bf16.mxu0 0
  %508 = vmatpush1.bf16.msra.mxu0 0
  %509 = vmatprep.subr.bf16.mxu0 0
  %510 = vmatpush1.bf16.msra.mxu0 0
  %511 = vmatprep.subr.bf16.mxu0 0
  %512 = vmatpush1.bf16.msra.mxu0 0
  %513 = vmatprep.subr.bf16.mxu0 0
  %514 = vmatpush1.bf16.msra.mxu0 0
  %515 = vmatprep.subr.bf16.mxu0 0
  %516 = vmatpush1.bf16.msra.mxu0 0
  %517 = vmatprep.subr.bf16.mxu0 0
  %518 = vmatpush1.bf16.msra.mxu0 0
  %519 = vmatprep.mubr.bf16.mxu0 0
  %520 = vmatmul.mubr.bf16.gmra.mrb[0].mxu0 %v485
  %v521 = vpop.f32.mrb[0].mxu0
  %v522 = vadd.f32 0.0, %v521
  %v523 = vpop.f32.mrb[0].mxu0
  %v524 = vpop.f32.mrb[0].mxu0
  %v525 = vadd.f32 0.0, %v524
  %v526 = vpop.f32.mrb[0].mxu0
  %527 = vdwg.mxu0
  %v528 = vunpack.c.l.bf16 %v479
  %v529 = vunpack.c.h.bf16 %v479
  %v530 = vadd.f32 %v528, %v522
  %v531 = vadd.f32 %v529, %v525
  %v532 = vxor.u32 %v530, 2147483648
  %v533 = vxor.u32 %v531, 2147483648
  %v534 = vmul.f32 %v532, 1.442695
  %v535 = vpow.pop %v534
  %v536 = vmul.f32 %v533, 1.442695
  %v537 = vpow.pop %v536
  %v538 = vadd.f32 %v535, 1.0
  %v539 = vadd.f32 %v537, 1.0
  %v540 = vrcp.pop %v538
  %v541 = vmul.f32 1.0, %v540
  %v542 = vrcp.pop %v539
  %v543 = vmul.f32 1.0, %v542
  %v544 = vtanh.pop %v530
  %v545 = vtanh.pop %v531
  %v546 = vmul.f32 %v541, %v464
  %v547 = vmul.f32 %v543, %v465
  %550 = vrot.lane.b32.xlu0 %v544, 32
  %v551 = vpop.permute.xlu0 %550
  %552 = vrot.lane.b32.xlu0 %v545, 32
  %v553 = vpop.permute.xlu0 %552
  %v556 = vmul.f32 %v541, %v551
  %v557 = vmul.f32 %v543, %v553
  %560 = vrot.lane.b32.xlu0 %v556, 32
  %v561 = vpop.permute.xlu0 %560
  %562 = vrot.lane.b32.xlu0 %v557, 32
  %v563 = vpop.permute.xlu0 %562
  %v566 = vadd.f32 %v546, %v561
  %v567 = vadd.f32 %v547, %v563
  %v568 = vtanh.pop %v566
  %v569 = vtanh.pop %v567
  %572 = vrot.lane.b32.xlu0 %v568, 32
  %v573 = vpop.permute.xlu0 %572
  %574 = vrot.lane.b32.xlu0 %v569, 32
  %v575 = vpop.permute.xlu0 %574
  %v578 = vmul.f32 %v541, %v573
  %v579 = vmul.f32 %v543, %v575
  %s580 = scalar_lea.vmem [#allocation4], 24
  %v581 = vld [vmem:[%s580] sm:$0xff]
  %v582 = vpack.c.bf16 %v579, %v578
  %584 = vrot.lane.b32.xlu0 %v582, 64
  %v585 = vpop.permute.xlu0 %584
  %v587 = vsel %vm271, %v585, 0
  %589 = vmatprep.subr.bf16.mxu0 0
  %590 = vmatpush1.bf16.msra.mxu0 %v267
  %591 = vmatprep.subr.bf16.mxu0 0
  %592 = vmatpush1.bf16.msra.mxu0 %v268
  %593 = vmatprep.subr.bf16.mxu0 0
  %594 = vmatpush1.bf16.msra.mxu0 0
  %595 = vmatprep.subr.bf16.mxu0 0
  %596 = vmatpush1.bf16.msra.mxu0 0
  %597 = vmatprep.subr.bf16.mxu0 0
  %598 = vmatpush1.bf16.msra.mxu0 0
  %599 = vmatprep.subr.bf16.mxu0 0
  %600 = vmatpush1.bf16.msra.mxu0 0
  %601 = vmatprep.subr.bf16.mxu0 0
  %602 = vmatpush1.bf16.msra.mxu0 0
  %603 = vmatprep.subr.bf16.mxu0 0
  %604 = vmatpush1.bf16.msra.mxu0 0
  %605 = vmatprep.subr.bf16.mxu0 0
  %606 = vmatpush1.bf16.msra.mxu0 0
  %607 = vmatprep.subr.bf16.mxu0 0
  %608 = vmatpush1.bf16.msra.mxu0 0
  %609 = vmatprep.subr.bf16.mxu0 0
  %610 = vmatpush1.bf16.msra.mxu0 0
  %611 = vmatprep.subr.bf16.mxu0 0
  %612 = vmatpush1.bf16.msra.mxu0 0
  %613 = vmatprep.subr.bf16.mxu0 0
  %614 = vmatpush1.bf16.msra.mxu0 0
  %615 = vmatprep.subr.bf16.mxu0 0
  %616 = vmatpush1.bf16.msra.mxu0 0
  %617 = vmatprep.subr.bf16.mxu0 0
  %618 = vmatpush1.bf16.msra.mxu0 0
  %619 = vmatprep.subr.bf16.mxu0 0
  %620 = vmatpush1.bf16.msra.mxu0 0
  %621 = vmatprep.mubr.bf16.mxu0 0
  %622 = vmatmul.mubr.bf16.gmra.mrb[0].mxu0 %v587
  %v623 = vpop.f32.mrb[0].mxu0
  %v624 = vadd.f32 0.0, %v623
  %v625 = vpop.f32.mrb[0].mxu0
  %v626 = vpop.f32.mrb[0].mxu0
  %v627 = vadd.f32 0.0, %v626
  %v628 = vpop.f32.mrb[0].mxu0
  %629 = vdwg.mxu0
  %v630 = vunpack.c.l.bf16 %v581
  %v631 = vunpack.c.h.bf16 %v581
  %v632 = vadd.f32 %v630, %v624
  %v633 = vadd.f32 %v631, %v627
  %v634 = vxor.u32 %v632, 2147483648
  %v635 = vxor.u32 %v633, 2147483648
  %v636 = vmul.f32 %v634, 1.442695
  %v637 = vpow.pop %v636
  %v638 = vmul.f32 %v635, 1.442695
  %v639 = vpow.pop %v638
  %v640 = vadd.f32 %v637, 1.0
  %v641 = vadd.f32 %v639, 1.0
  %v642 = vrcp.pop %v640
  %v643 = vmul.f32 1.0, %v642
  %v644 = vrcp.pop %v641
  %v645 = vmul.f32 1.0, %v644
  %v646 = vtanh.pop %v632
  %v647 = vtanh.pop %v633
  %v648 = vmul.f32 %v643, %v566
  %v649 = vmul.f32 %v645, %v567
  %652 = vrot.lane.b32.xlu0 %v646, 32
  %v653 = vpop.permute.xlu0 %652
  %654 = vrot.lane.b32.xlu0 %v647, 32
  %v655 = vpop.permute.xlu0 %654
  %v658 = vmul.f32 %v643, %v653
  %v659 = vmul.f32 %v645, %v655
  %662 = vrot.lane.b32.xlu0 %v658, 32
  %v663 = vpop.permute.xlu0 %662
  %664 = vrot.lane.b32.xlu0 %v659, 32
  %v665 = vpop.permute.xlu0 %664
  %v668 = vadd.f32 %v648, %v663
  %v669 = vadd.f32 %v649, %v665
  %v670 = vtanh.pop %v668
  %v671 = vtanh.pop %v669
  %674 = vrot.lane.b32.xlu0 %v670, 32
  %v675 = vpop.permute.xlu0 %674
  %676 = vrot.lane.b32.xlu0 %v671, 32
  %v677 = vpop.permute.xlu0 %676
  %v680 = vmul.f32 %v643, %v675
  %v681 = vmul.f32 %v645, %v677
  %s682 = scalar_lea.vmem [#allocation4], 32
  %v683 = vld [vmem:[%s682] sm:$0xff]
  %v684 = vpack.c.bf16 %v681, %v680
  %686 = vrot.lane.b32.xlu0 %v684, 64
  %v687 = vpop.permute.xlu0 %686
  %v689 = vsel %vm271, %v687, 0
  %691 = vmatprep.subr.bf16.mxu0 0
  %692 = vmatpush1.bf16.msra.mxu0 %v267
  %693 = vmatprep.subr.bf16.mxu0 0
  %694 = vmatpush1.bf16.msra.mxu0 %v268
  %695 = vmatprep.subr.bf16.mxu0 0
  %696 = vmatpush1.bf16.msra.mxu0 0
  %697 = vmatprep.subr.bf16.mxu0 0
  %698 = vmatpush1.bf16.msra.mxu0 0
  %699 = vmatprep.subr.bf16.mxu0 0
  %700 = vmatpush1.bf16.msra.mxu0 0
  %701 = vmatprep.subr.bf16.mxu0 0
  %702 = vmatpush1.bf16.msra.mxu0 0
  %703 = vmatprep.subr.bf16.mxu0 0
  %704 = vmatpush1.bf16.msra.mxu0 0
  %705 = vmatprep.subr.bf16.mxu0 0
  %706 = vmatpush1.bf16.msra.mxu0 0
  %707 = vmatprep.subr.bf16.mxu0 0
  %708 = vmatpush1.bf16.msra.mxu0 0
  %709 = vmatprep.subr.bf16.mxu0 0
  %710 = vmatpush1.bf16.msra.mxu0 0
  %711 = vmatprep.subr.bf16.mxu0 0
  %712 = vmatpush1.bf16.msra.mxu0 0
  %713 = vmatprep.subr.bf16.mxu0 0
  %714 = vmatpush1.bf16.msra.mxu0 0
  %715 = vmatprep.subr.bf16.mxu0 0
  %716 = vmatpush1.bf16.msra.mxu0 0
  %717 = vmatprep.subr.bf16.mxu0 0
  %718 = vmatpush1.bf16.msra.mxu0 0
  %719 = vmatprep.subr.bf16.mxu0 0
  %720 = vmatpush1.bf16.msra.mxu0 0
  %721 = vmatprep.subr.bf16.mxu0 0
  %722 = vmatpush1.bf16.msra.mxu0 0
  %723 = vmatprep.mubr.bf16.mxu0 0
  %724 = vmatmul.mubr.bf16.gmra.mrb[0].mxu0 %v689
  %v725 = vpop.f32.mrb[0].mxu0
  %v726 = vadd.f32 0.0, %v725
  %v727 = vpop.f32.mrb[0].mxu0
  %v728 = vpop.f32.mrb[0].mxu0
  %v729 = vadd.f32 0.0, %v728
  %v730 = vpop.f32.mrb[0].mxu0
  %731 = vdwg.mxu0
  %v732 = vunpack.c.l.bf16 %v683
  %v733 = vunpack.c.h.bf16 %v683
  %v734 = vadd.f32 %v732, %v726
  %v735 = vadd.f32 %v733, %v729
  %v736 = vxor.u32 %v734, 2147483648
  %v737 = vxor.u32 %v735, 2147483648
  %v738 = vmul.f32 %v736, 1.442695
  %v739 = vpow.pop %v738
  %v740 = vmul.f32 %v737, 1.442695
  %v741 = vpow.pop %v740
  %v742 = vadd.f32 %v739, 1.0
  %v743 = vadd.f32 %v741, 1.0
  %v744 = vrcp.pop %v742
  %v745 = vmul.f32 1.0, %v744
  %v746 = vrcp.pop %v743
  %v747 = vmul.f32 1.0, %v746
  %v748 = vtanh.pop %v734
  %v749 = vtanh.pop %v735
  %v750 = vmul.f32 %v745, %v668
  %v751 = vmul.f32 %v747, %v669
  %754 = vrot.lane.b32.xlu0 %v748, 32
  %v755 = vpop.permute.xlu0 %754
  %756 = vrot.lane.b32.xlu0 %v749, 32
  %v757 = vpop.permute.xlu0 %756
  %v760 = vmul.f32 %v745, %v755
  %v761 = vmul.f32 %v747, %v757
  %764 = vrot.lane.b32.xlu0 %v760, 32
  %v765 = vpop.permute.xlu0 %764
  %766 = vrot.lane.b32.xlu0 %v761, 32
  %v767 = vpop.permute.xlu0 %766
  %v770 = vadd.f32 %v750, %v765
  %v771 = vadd.f32 %v751, %v767
  %v772 = vtanh.pop %v770
  %v773 = vtanh.pop %v771
  %776 = vrot.lane.b32.xlu0 %v772, 32
  %v777 = vpop.permute.xlu0 %776
  %778 = vrot.lane.b32.xlu0 %v773, 32
  %v779 = vpop.permute.xlu0 %778
  %v782 = vmul.f32 %v745, %v777
  %v783 = vmul.f32 %v747, %v779
  %s784 = scalar_lea.vmem [#allocation4], 40
  %v785 = vld [vmem:[%s784] sm:$0xff]
  %v786 = vpack.c.bf16 %v783, %v782
  %788 = vrot.lane.b32.xlu0 %v786, 64
  %v789 = vpop.permute.xlu0 %788
  %v791 = vsel %vm271, %v789, 0
  %793 = vmatprep.subr.bf16.mxu0 0
  %794 = vmatpush1.bf16.msra.mxu0 %v267
  %795 = vmatprep.subr.bf16.mxu0 0
  %796 = vmatpush1.bf16.msra.mxu0 %v268
  %797 = vmatprep.subr.bf16.mxu0 0
  %798 = vmatpush1.bf16.msra.mxu0 0
  %799 = vmatprep.subr.bf16.mxu0 0
  %800 = vmatpush1.bf16.msra.mxu0 0
  %801 = vmatprep.subr.bf16.mxu0 0
  %802 = vmatpush1.bf16.msra.mxu0 0
  %803 = vmatprep.subr.bf16.mxu0 0
  %804 = vmatpush1.bf16.msra.mxu0 0
  %805 = vmatprep.subr.bf16.mxu0 0
  %806 = vmatpush1.bf16.msra.mxu0 0
  %807 = vmatprep.subr.bf16.mxu0 0
  %808 = vmatpush1.bf16.msra.mxu0 0
  %809 = vmatprep.subr.bf16.mxu0 0
  %810 = vmatpush1.bf16.msra.mxu0 0
  %811 = vmatprep.subr.bf16.mxu0 0
  %812 = vmatpush1.bf16.msra.mxu0 0
  %813 = vmatprep.subr.bf16.mxu0 0
  %814 = vmatpush1.bf16.msra.mxu0 0
  %815 = vmatprep.subr.bf16.mxu0 0
  %816 = vmatpush1.bf16.msra.mxu0 0
  %817 = vmatprep.subr.bf16.mxu0 0
  %818 = vmatpush1.bf16.msra.mxu0 0
  %819 = vmatprep.subr.bf16.mxu0 0
  %820 = vmatpush1.bf16.msra.mxu0 0
  %821 = vmatprep.subr.bf16.mxu0 0
  %822 = vmatpush1.bf16.msra.mxu0 0
  %823 = vmatprep.subr.bf16.mxu0 0
  %824 = vmatpush1.bf16.msra.mxu0 0
  %825 = vmatprep.mubr.bf16.mxu0 0
  %826 = vmatmul.mubr.bf16.gmra.mrb[0].mxu0 %v791
  %v827 = vpop.f32.mrb[0].mxu0
  %v828 = vadd.f32 0.0, %v827
  %v829 = vpop.f32.mrb[0].mxu0
  %v830 = vpop.f32.mrb[0].mxu0
  %v831 = vadd.f32 0.0, %v830
  %v832 = vpop.f32.mrb[0].mxu0
  %833 = vdwg.mxu0
  %v834 = vunpack.c.l.bf16 %v785
  %v835 = vunpack.c.h.bf16 %v785
  %v836 = vadd.f32 %v834, %v828
  %v837 = vadd.f32 %v835, %v831
  %v838 = vxor.u32 %v836, 2147483648
  %v839 = vxor.u32 %v837, 2147483648
  %v840 = vmul.f32 %v838, 1.442695
  %v841 = vpow.pop %v840
  %v842 = vmul.f32 %v839, 1.442695
  %v843 = vpow.pop %v842
  %v844 = vadd.f32 %v841, 1.0
  %v845 = vadd.f32 %v843, 1.0
  %v846 = vrcp.pop %v844
  %v847 = vmul.f32 1.0, %v846
  %v848 = vrcp.pop %v845
  %v849 = vmul.f32 1.0, %v848
  %v850 = vtanh.pop %v836
  %v851 = vtanh.pop %v837
  %v852 = vmul.f32 %v847, %v770
  %v853 = vmul.f32 %v849, %v771
  %856 = vrot.lane.b32.xlu0 %v850, 32
  %v857 = vpop.permute.xlu0 %856
  %858 = vrot.lane.b32.xlu0 %v851, 32
  %v859 = vpop.permute.xlu0 %858
  %v862 = vmul.f32 %v847, %v857
  %v863 = vmul.f32 %v849, %v859
  %866 = vrot.lane.b32.xlu0 %v862, 32
  %v867 = vpop.permute.xlu0 %866
  %868 = vrot.lane.b32.xlu0 %v863, 32
  %v869 = vpop.permute.xlu0 %868
  %v872 = vadd.f32 %v852, %v867
  %v873 = vadd.f32 %v853, %v869
  %v874 = vtanh.pop %v872
  %v875 = vtanh.pop %v873
  %878 = vrot.lane.b32.xlu0 %v874, 32
  %v879 = vpop.permute.xlu0 %878
  %880 = vrot.lane.b32.xlu0 %v875, 32
  %v881 = vpop.permute.xlu0 %880
  %v884 = vmul.f32 %v847, %v879
  %v885 = vmul.f32 %v849, %v881
  %s886 = scalar_lea.vmem [#allocation4], 48
  %v887 = vld [vmem:[%s886] sm:$0xff]
  %v888 = vpack.c.bf16 %v885, %v884
  %890 = vrot.lane.b32.xlu0 %v888, 64
  %v891 = vpop.permute.xlu0 %890
  %v893 = vsel %vm271, %v891, 0
  %895 = vmatprep.subr.bf16.mxu0 0
  %896 = vmatpush1.bf16.msra.mxu0 %v267
  %897 = vmatprep.subr.bf16.mxu0 0
  %898 = vmatpush1.bf16.msra.mxu0 %v268
  %899 = vmatprep.subr.bf16.mxu0 0
  %900 = vmatpush1.bf16.msra.mxu0 0
  %901 = vmatprep.subr.bf16.mxu0 0
  %902 = vmatpush1.bf16.msra.mxu0 0
  %903 = vmatprep.subr.bf16.mxu0 0
  %904 = vmatpush1.bf16.msra.mxu0 0
  %905 = vmatprep.subr.bf16.mxu0 0
  %906 = vmatpush1.bf16.msra.mxu0 0
  %907 = vmatprep.subr.bf16.mxu0 0
  %908 = vmatpush1.bf16.msra.mxu0 0
  %909 = vmatprep.subr.bf16.mxu0 0
  %910 = vmatpush1.bf16.msra.mxu0 0
  %911 = vmatprep.subr.bf16.mxu0 0
  %912 = vmatpush1.bf16.msra.mxu0 0
  %913 = vmatprep.subr.bf16.mxu0 0
  %914 = vmatpush1.bf16.msra.mxu0 0
  %915 = vmatprep.subr.bf16.mxu0 0
  %916 = vmatpush1.bf16.msra.mxu0 0
  %917 = vmatprep.subr.bf16.mxu0 0
  %918 = vmatpush1.bf16.msra.mxu0 0
  %919 = vmatprep.subr.bf16.mxu0 0
  %920 = vmatpush1.bf16.msra.mxu0 0
  %921 = vmatprep.subr.bf16.mxu0 0
  %922 = vmatpush1.bf16.msra.mxu0 0
  %923 = vmatprep.subr.bf16.mxu0 0
  %924 = vmatpush1.bf16.msra.mxu0 0
  %925 = vmatprep.subr.bf16.mxu0 0
  %926 = vmatpush1.bf16.msra.mxu0 0
  %927 = vmatprep.mubr.bf16.mxu0 0
  %928 = vmatmul.mubr.bf16.gmra.mrb[0].mxu0 %v893
  %v929 = vpop.f32.mrb[0].mxu0
  %v930 = vadd.f32 0.0, %v929
  %v931 = vpop.f32.mrb[0].mxu0
  %v932 = vpop.f32.mrb[0].mxu0
  %v933 = vadd.f32 0.0, %v932
  %v934 = vpop.f32.mrb[0].mxu0
  %935 = vdwg.mxu0
  %v936 = vunpack.c.l.bf16 %v887
  %v937 = vunpack.c.h.bf16 %v887
  %v938 = vadd.f32 %v936, %v930
  %v939 = vadd.f32 %v937, %v933
  %v940 = vxor.u32 %v938, 2147483648
  %v941 = vxor.u32 %v939, 2147483648
  %v942 = vmul.f32 %v940, 1.442695
  %v943 = vpow.pop %v942
  %v944 = vmul.f32 %v941, 1.442695
  %v945 = vpow.pop %v944
  %v946 = vadd.f32 %v943, 1.0
  %v947 = vadd.f32 %v945, 1.0
  %v948 = vrcp.pop %v946
  %v949 = vmul.f32 1.0, %v948
  %v950 = vrcp.pop %v947
  %v951 = vmul.f32 1.0, %v950
  %v952 = vtanh.pop %v938
  %v953 = vtanh.pop %v939
  %v954 = vmul.f32 %v949, %v872
  %v955 = vmul.f32 %v951, %v873
  %958 = vrot.lane.b32.xlu0 %v952, 32
  %v959 = vpop.permute.xlu0 %958
  %960 = vrot.lane.b32.xlu0 %v953, 32
  %v961 = vpop.permute.xlu0 %960
  %v964 = vmul.f32 %v949, %v959
  %v965 = vmul.f32 %v951, %v961
  %968 = vrot.lane.b32.xlu0 %v964, 32
  %v969 = vpop.permute.xlu0 %968
  %970 = vrot.lane.b32.xlu0 %v965, 32
  %v971 = vpop.permute.xlu0 %970
  %v974 = vadd.f32 %v954, %v969
  %v975 = vadd.f32 %v955, %v971
  %v976 = vtanh.pop %v974
  %v977 = vtanh.pop %v975
  %980 = vrot.lane.b32.xlu0 %v976, 32
  %v981 = vpop.permute.xlu0 %980
  %982 = vrot.lane.b32.xlu0 %v977, 32
  %v983 = vpop.permute.xlu0 %982
  %v986 = vmul.f32 %v949, %v981
  %v987 = vmul.f32 %v951, %v983
  %s988 = scalar_lea.vmem [#allocation4], 56
  %v989 = vld [vmem:[%s988] sm:$0xff]
  %v990 = vpack.c.bf16 %v987, %v986
  %992 = vrot.lane.b32.xlu0 %v990, 64
  %v993 = vpop.permute.xlu0 %992
  %v995 = vsel %vm271, %v993, 0
  %997 = vmatprep.subr.bf16.mxu0 0
  %998 = vmatpush1.bf16.msra.mxu0 %v267
  %999 = vmatprep.subr.bf16.mxu0 0
  %1000 = vmatpush1.bf16.msra.mxu0 %v268
  %1001 = vmatprep.subr.bf16.mxu0 0
  %1002 = vmatpush1.bf16.msra.mxu0 0
  %1003 = vmatprep.subr.bf16.mxu0 0
  %1004 = vmatpush1.bf16.msra.mxu0 0
  %1005 = vmatprep.subr.bf16.mxu0 0
  %1006 = vmatpush1.bf16.msra.mxu0 0
  %1007 = vmatprep.subr.bf16.mxu0 0
  %1008 = vmatpush1.bf16.msra.mxu0 0
  %1009 = vmatprep.subr.bf16.mxu0 0
  %1010 = vmatpush1.bf16.msra.mxu0 0
  %1011 = vmatprep.subr.bf16.mxu0 0
  %1012 = vmatpush1.bf16.msra.mxu0 0
  %1013 = vmatprep.subr.bf16.mxu0 0
  %1014 = vmatpush1.bf16.msra.mxu0 0
  %1015 = vmatprep.subr.bf16.mxu0 0
  %1016 = vmatpush1.bf16.msra.mxu0 0
  %1017 = vmatprep.subr.bf16.mxu0 0
  %1018 = vmatpush1.bf16.msra.mxu0 0
  %1019 = vmatprep.subr.bf16.mxu0 0
  %1020 = vmatpush1.bf16.msra.mxu0 0
  %1021 = vmatprep.subr.bf16.mxu0 0
  %1022 = vmatpush1.bf16.msra.mxu0 0
  %1023 = vmatprep.subr.bf16.mxu0 0
  %1024 = vmatpush1.bf16.msra.mxu0 0
  %1025 = vmatprep.subr.bf16.mxu0 0
  %1026 = vmatpush1.bf16.msra.mxu0 0
  %1027 = vmatprep.subr.bf16.mxu0 0
  %1028 = vmatpush1.bf16.msra.mxu0 0
  %1029 = vmatprep.mubr.bf16.mxu0 0
  %1030 = vmatmul.mubr.bf16.gmra.mrb[0].mxu0 %v995
  %v1031 = vpop.f32.mrb[0].mxu0
  %v1032 = vadd.f32 0.0, %v1031
  %v1033 = vpop.f32.mrb[0].mxu0
  %v1034 = vpop.f32.mrb[0].mxu0
  %v1035 = vadd.f32 0.0, %v1034
  %v1036 = vpop.f32.mrb[0].mxu0
  %1037 = vdwg.mxu0
  %v1038 = vunpack.c.l.bf16 %v989
  %v1039 = vunpack.c.h.bf16 %v989
  %v1040 = vadd.f32 %v1038, %v1032
  %v1041 = vadd.f32 %v1039, %v1035
  %v1042 = vxor.u32 %v1040, 2147483648
  %v1043 = vxor.u32 %v1041, 2147483648
  %v1044 = vmul.f32 %v1042, 1.442695
  %v1045 = vpow.pop %v1044
  %v1046 = vmul.f32 %v1043, 1.442695
  %v1047 = vpow.pop %v1046
  %v1048 = vadd.f32 %v1045, 1.0
  %v1049 = vadd.f32 %v1047, 1.0
  %v1050 = vrcp.pop %v1048
  %v1051 = vmul.f32 1.0, %v1050
  %v1052 = vrcp.pop %v1049
  %v1053 = vmul.f32 1.0, %v1052
  %v1054 = vtanh.pop %v1040
  %v1055 = vtanh.pop %v1041
  %v1056 = vmul.f32 %v1051, %v974
  %v1057 = vmul.f32 %v1053, %v975
  %1060 = vrot.lane.b32.xlu0 %v1054, 32
  %v1061 = vpop.permute.xlu0 %1060
  %1062 = vrot.lane.b32.xlu0 %v1055, 32
  %v1063 = vpop.permute.xlu0 %1062
  %v1066 = vmul.f32 %v1051, %v1061
  %v1067 = vmul.f32 %v1053, %v1063
  %1070 = vrot.lane.b32.xlu0 %v1066, 32
  %v1071 = vpop.permute.xlu0 %1070
  %1072 = vrot.lane.b32.xlu0 %v1067, 32
  %v1073 = vpop.permute.xlu0 %1072
  %v1076 = vadd.f32 %v1056, %v1071
  %v1077 = vadd.f32 %v1057, %v1073
  %v1078 = vtanh.pop %v1076
  %v1079 = vtanh.pop %v1077
  %1082 = vrot.lane.b32.xlu0 %v1078, 32
  %v1083 = vpop.permute.xlu0 %1082
  %1084 = vrot.lane.b32.xlu0 %v1079, 32
  %v1085 = vpop.permute.xlu0 %1084
  %v1088 = vmul.f32 %v1051, %v1083
  %v1089 = vmul.f32 %v1053, %v1085
  %1092 = vrot.lane.b32.xlu0 %v1088, 64
  %v1093 = vpop.permute.xlu0 %1092
  %1094 = vrot.lane.b32.xlu0 %v1089, 64
  %v1095 = vpop.permute.xlu0 %1094
  %1098 = vst.msk [vmem:[#allocation2] sm:$0xff] %vm271, %v1093
  %1099 = vst.msk [vmem:[#allocation2 + $0x8] sm:$0xff] %vm271, %v1095
  %1102 = vrot.lane.b32.xlu0 %v1076, 96
  %v1103 = vpop.permute.xlu0 %1102
  %1104 = vrot.lane.b32.xlu0 %v1077, 96
  %v1105 = vpop.permute.xlu0 %1104
  %1108 = vst.msk [vmem:[#allocation3] sm:$0xff] %vm271, %v1103
  %1109 = vst.msk [vmem:[#allocation3 + $0x8] sm:$0xff] %vm271, %v1105
  // Predicated region
  $region38: #{lstm_forward.1} parent=0 // pred_check
    %p1110 = pneg %p31
  $region39: #{lstm_forward.1} parent=0 // pred_check_branch
    %1112 = sbr.rel (%p1110) target = $region41
  $region40: #{lstm_forward.1} parent=0 // pred_region
    %v1113 = vsel %vm271, %v1093, 0.0
    %1114 = vadd.xlane.f32.xlu0 %v1113
    %v1115 = vpop.xlane.xlu0 %1114
    %v1116 = vsel %vm271, %v1095, 0.0
    %1117 = vadd.xlane.f32.xlu0 %v1116
    %v1118 = vpop.xlane.xlu0 %1117
    %v1119 = vrcp.pop 32.0
    %v1120 = vmul.f32 %v1115, %v1119
    %v1121 = vmul.f32 %v1118, %v1119
    %v1122 = vsub.f32 %v1088, %v1120
    %v1123 = vsub.f32 %v1089, %v1121
    %v1124 = vmul.f32 %v1122, %v1122
    %v1125 = vmul.f32 %v1123, %v1123
    %1128 = vrot.lane.b32.xlu0 %v1124, 64
    %v1129 = vpop.permute.xlu0 %1128
    %1130 = vrot.lane.b32.xlu0 %v1125, 64
    %v1131 = vpop.permute.xlu0 %1130
    %v1134 = vsel %vm271, %v1129, 0.0
    %1135 = vadd.xlane.f32.xlu0 %v1134
    %v1136 = vpop.xlane.xlu0 %1135
    %v1137 = vsel %vm271, %v1131, 0.0
    %1138 = vadd.xlane.f32.xlu0 %v1137
    %v1139 = vpop.xlane.xlu0 %1138
    %v1140 = vmul.f32 %v1136, %v1119
    %v1141 = vmul.f32 %v1139, %v1119
    %v1142 = vadd.f32 %v1140, 1e-05
    %v1143 = vadd.f32 %v1141, 1e-05
    %v1144 = vrsqrt.pop %v1142
    %v1145 = vrsqrt.pop %v1143
    %v1146 = vmul.f32 %v1122, %v1144
    %v1147 = vmul.f32 %v1123, %v1145
    %v1148 = vld [vmem:[%s4] sm:$0x1]
    %v1150 = vlaneseq
    %v1151 = vshrl.u32 %v1150, 7
    %v1152 = vsub.s32 0, %v1151
    %v1153 = vrot.slane %v1148, %v1152
    %1154 = vrot.lane.b32.xlu0 %v1153, 64
    %v1155 = vpop.permute.xlu0 %1154
    %v1157 = vmul.f32 %v1146, %v1155
    %v1158 = vmul.f32 %v1147, %v1155
    %v1159 = vld [vmem:[%s5] sm:$0x1]
    %v1161 = vlaneseq
    %v1162 = vshrl.u32 %v1161, 7
    %v1163 = vsub.s32 0, %v1162
    %v1164 = vrot.slane %v1159, %v1163
    %1165 = vrot.lane.b32.xlu0 %v1164, 64
    %v1166 = vpop.permute.xlu0 %1165
    %v1168 = vadd.f32 %v1157, %v1166
    %v1169 = vadd.f32 %v1158, %v1166
    %v1170 = vld [vmem:[%s6] sm:$0x1]
    %v1172 = vlaneseq
    %v1173 = vshrl.u32 %v1172, 7
    %v1174 = vsub.s32 0, %v1173
    %v1175 = vrot.slane %v1170, %v1174
    %1176 = vrot.lane.b32.xlu0 %v1175, 64
    %v1177 = vpop.permute.xlu0 %1176
    %v1179 = vmul.f32 %v1168, %v1177
    %v1180 = vmul.f32 %v1169, %v1177
    %1183 = vrot.lane.b32.xlu0 %v1179, 64
    %v1184 = vpop.permute.xlu0 %1183
    %1185 = vrot.lane.b32.xlu0 %v1180, 64
    %v1186 = vpop.permute.xlu0 %1185
    %v1189 = vsel %vm271, %v1184, 0.0
    %1190 = vadd.xlane.f32.xlu0 %v1189
    %v1191 = vpop.xlane.xlu0 %1190
    %v1192 = vsel %vm271, %v1186, 0.0
    %1193 = vadd.xlane.f32.xlu0 %v1192
    %v1194 = vpop.xlane.xlu0 %1193
    %s1195 = sld [smem:[#allocation5]]
    %v1196 = vstv %s1195
    %v1197 = vadd.f32 %v1191, %v1196
    %v1198 = vadd.f32 %v1194, %v1196
    %v1199 = vxor.u32 %v1197, 2147483648
    %v1200 = vxor.u32 %v1198, 2147483648
    %v1201 = vmul.f32 %v1199, 1.442695
    %v1202 = vpow.pop %v1201
    %v1203 = vmul.f32 %v1200, 1.442695
    %v1204 = vpow.pop %v1203
    %v1205 = vadd.f32 %v1202, 1.0
    %v1206 = vadd.f32 %v1204, 1.0
    %v1207 = vrcp.pop %v1205
    %v1208 = vmul.f32 1.0, %v1207
    %v1209 = vrcp.pop %v1206
    %v1210 = vmul.f32 1.0, %v1209
    %vm1211 = vcmask 7168
    %1212 = vst.msk [vmem:[%s8] sm:$0xff] %vm1211, %v1208
    %1213 = vst.msk [vmem:[%s8 + $0x8] sm:$0xff] %vm1211, %v1210
  $region41: #{lstm_forward.1} parent=0 // pred_fallthru
    _
  // Predicated region
  $region42: #{lstm_forward.1} parent=0 // pred_check
    _
  $region43: #{lstm_forward.1} parent=0 // pred_check_branch
    %1215 = sbr.rel (0) target = $region45
  $region44: #{lstm_forward.1} parent=0 // pred_region
    _
  $region45: #{lstm_forward.1} parent=0 // pred_fallthru
    _
  // Predicated region
  $region46: #{lstm_forward.1} parent=0 // pred_check
    _
  $region47: #{lstm_forward.1} parent=0 // pred_check_branch
    %1217 = sbr.rel (0) target = $region49
  $region48: #{lstm_forward.1} parent=0 // pred_region
    _
  $region49: #{lstm_forward.1} parent=0 // pred_fallthru
    _

</llo_original>
